<compile_context>
chip_gen: v7x
topology: tpu7x:2x2x1
jax: 0.10.0
libtpu: 0.0.40
codegen_flags: <defaults>
</compile_context>

<pallas_src>
import jax
import jax.numpy as jnp
from jax.experimental import pallas as pl
from jax.experimental.pallas import tpu as pltpu

OUT_PAD = 128   # lane-dense padded width of the kernel's logit output


def _bilstm_kernel(ids_ref,      # VMEM (T*B, 1) int32 token ids, time-major
                   tab_f_ref,    # VMEM (Vp, 4H)  embed @ W_ih_fwd, zero-padded rows
                   tab_b_ref,    # VMEM (Vp, 4H)  embed @ W_ih_bwd, zero-padded rows
                   b_f_ref,      # VMEM (1, 4H)   b_ih_fwd + b_hh_fwd
                   b_b_ref,      # VMEM (1, 4H)   b_ih_bwd + b_hh_bwd
                   whh_f_ref,    # VMEM (H, 4H)   forward W_hh, (in, out)
                   wfc_f_ref,    # VMEM (H, OUT_PAD) fc weight (fwd half), padded
                   wfc_b_ref,    # VMEM (H, OUT_PAD) fc weight (bwd half), padded
                   bfc_ref,      # VMEM (1, OUT_PAD) fc bias, padded
                   out_ref):     # VMEM (B, OUT_PAD)
    B = out_ref.shape[0]
    TB = ids_ref.shape[0]
    T = TB // B
    H = whh_f_ref.shape[0]
    Vp = tab_f_ref.shape[0]

    # ---- one-hot token matrix (VPU compare, no serial gather) ---------------
    ids_col = ids_ref[...]                                      # (T*B, 1) int32
    lane = jax.lax.broadcasted_iota(jnp.int32, (TB, Vp), 1)
    one_hot = (ids_col == lane).astype(jnp.float32)             # (T*B, Vp)

    # ---- input projection: forward gates for ALL steps, bias folded in ------
    gates_f = (jnp.dot(one_hot, tab_f_ref[...],
                       preferred_element_type=jnp.float32)
               + b_f_ref[...])                                   # (T*B, 4H)

    # ---- backward direction needs only x[:, T-1, :] (one-row one-hot slab) --
    g_b = (jnp.dot(one_hot[(T - 1) * B:TB, :], tab_b_ref[...],
                   preferred_element_type=jnp.float32)
           + b_b_ref[...])                                       # (B, 4H)

    whh_f = whh_f_ref[...]

    # ---- forward recurrence (fully unrolled, static tile-aligned slices) ----
    # TODO(synk): if T grows, keep gates_f in a VMEM scratch and load (B,4H)
    # per step (and switch to lax.fori_loop(unroll=True)) to avoid vreg spill;
    # on v5e, holding W_hh via pltpu.matmul_push_rhs would shave per-step MXU
    # occupancy.  Both are noise at T=8, H=32.
    h = jnp.zeros((B, H), jnp.float32)
    c = jnp.zeros((B, H), jnp.float32)
    for t in range(T):
        g_x = gates_f[t * B:(t + 1) * B, :]                      # (B, 4H)
        gates = g_x + jnp.dot(h, whh_f, preferred_element_type=jnp.float32)
        sg = jax.nn.sigmoid(gates)                               # whole-vreg EUP
        tg = jnp.tanh(gates)                                     # whole-vreg EUP
        i_g = sg[:, 0 * H:1 * H]
        f_g = sg[:, 1 * H:2 * H]
        g_g = tg[:, 2 * H:3 * H]
        o_g = sg[:, 3 * H:4 * H]
        c = f_g * c + i_g * g_g
        h = o_g * jnp.tanh(c)
    h_fwd = h

    # ---- backward direction ---------------------------------------------------
    # The classifier reads out[:, -1, :]; its backward half equals one LSTM
    # cell applied to x[:, T-1, :] from zero (h0, c0) (the reversed pass's
    # first step), so a single evaluation is exact.  W_hh_bwd never
    # contributes because h0 == 0, and f*c0 == 0.
    # TODO(synk): this shortcut assumes full-length (non-packed) sequences and
    # the out[:, -1, :] readout; a different readout needs the full reverse loop.
    sgb = jax.nn.sigmoid(g_b)
    tgb = jnp.tanh(g_b)
    c_b = sgb[:, 0 * H:1 * H] * tgb[:, 2 * H:3 * H]              # i * g
    h_bwd = sgb[:, 3 * H:4 * H] * jnp.tanh(c_b)                  # o * tanh(c)

    # ---- final projection, lane-dense padded output (no concat) -------------
    out_ref[...] = (jnp.dot(h_fwd, wfc_f_ref[...],
                            preferred_element_type=jnp.float32)
                    + jnp.dot(h_bwd, wfc_b_ref[...],
                              preferred_element_type=jnp.float32)
                    + bfc_ref[...])


def init_params(key, V, D, H):
    """PyTorch-equivalent parameters (weights stored transposed as (in, out))."""
    ks = jax.random.split(key, 10)
    s = 1.0 / float(H) ** 0.5

    def u(k, shape):
        return jax.random.uniform(k, shape, jnp.float32, -s, s)

    return dict(
        # nn.Embedding default: N(0, 1)
        embed=jax.random.normal(ks[0], (V, D), jnp.float32),
        # nn.LSTM default: U(-1/sqrt(H), 1/sqrt(H)); gate order i,f,g,o along 4H.
        wih_f=u(ks[1], (D, 4 * H)),
        whh_f=u(ks[2], (H, 4 * H)),
        b_f=u(ks[3], (1, 4 * H)) + u(ks[4], (1, 4 * H)),   # b_ih + b_hh
        wih_b=u(ks[5], (D, 4 * H)),
        whh_b=u(ks[6], (H, 4 * H)),   # kept for fidelity; unused (h0 == 0)
        b_b=u(ks[7], (1, 4 * H)) + u(ks[8], (1, 4 * H)),
        # fc.weight ~ normal, fc.bias = 0.1 (the module's intended init)
        w_fc=jax.random.normal(ks[9], (2 * H, 2), jnp.float32),
        b_fc=jnp.full((1, 2), 0.1, jnp.float32),
    )


def pack_params(p):
    """One-time host repack: pre-multiply embed into W_ih, pad fc to 128 lanes."""
    V, D = p["embed"].shape
    H = p["whh_f"].shape[0]
    Vp = ((V + 127) // 128) * 128        # lane-dense contraction dim for one-hot
    # embedding gather is linear, so  onehot(ids) @ (embed @ W_ih) == x @ W_ih
    # TODO(synk): at realistic vocab sizes keep these tables HBM-resident
    # (memory_space=pl.ANY + row DMA) instead of whole-array VMEM, especially
    # on v7x's 64 MiB VMEM.
    tab_f = jnp.zeros((Vp, 4 * H), jnp.float32).at[:V].set(p["embed"] @ p["wih_f"])
    tab_b = jnp.zeros((Vp, 4 * H), jnp.float32).at[:V].set(p["embed"] @ p["wih_b"])
    wfc_f = jnp.zeros((H, OUT_PAD), jnp.float32).at[:, :2].set(p["w_fc"][:H])
    wfc_b = jnp.zeros((H, OUT_PAD), jnp.float32).at[:, :2].set(p["w_fc"][H:])
    bfc = jnp.zeros((1, OUT_PAD), jnp.float32).at[:, :2].set(p["b_fc"])
    return dict(
        tab_f=tab_f, tab_b=tab_b,
        b_f=p["b_f"], b_b=p["b_b"],
        whh_f=p["whh_f"],
        wfc_f=wfc_f, wfc_b=wfc_b, bfc=bfc,
    )


def bilstm_forward(packed, ids):
    """ids: (B, T) int32 token ids (the module's x[0]). Returns (B, 2) logits."""
    B, T = ids.shape
    # time-major id column so row t*B+b is timestep t, batch b (tiny host-side op)
    ids_tm = ids.astype(jnp.int32).T.reshape(T * B, 1)

    vmem = pl.BlockSpec(memory_space=pltpu.MemorySpace.VMEM)

    out = pl.pallas_call(
        _bilstm_kernel,
        out_shape=jax.ShapeDtypeStruct((B, OUT_PAD), jnp.float32),
        in_specs=[vmem] * 9,
        out_specs=vmem,
        # TODO(synk): add a batch-tile grid (dimension_semantics=("parallel",))
        # so v7x's second TensorCore takes half the batch once B is large; at
        # B=8 a grid only adds ~0.35 us/step overhead.
    )(ids_tm, packed["tab_f"], packed["tab_b"], packed["b_f"], packed["b_b"],
      packed["whh_f"], packed["wfc_f"], packed["wfc_b"], packed["bfc"])
    return out[:, :2]


if __name__ == "__main__":
    V, D, H = 50, 32, 32        # embed_num, embed_dim, hidden_size
    B, T = 8, 8                 # batch, sequence length

    key = jax.random.PRNGKey(0)
    pkey, dkey = jax.random.split(key)
    params = init_params(pkey, V, D, H)
    packed = pack_params(params)

    ids = jax.random.randint(dkey, (B, T), 0, V, dtype=jnp.int32)
    x = (ids,)                  # the module's forward indexes x[0]

    logits = bilstm_forward(packed, x[0])
    jax.block_until_ready(logits)
    assert logits.shape == (B, 2) and logits.dtype == jnp.float32
    print("KERNEL_OK")
</pallas_src>

<mosaic_0001>
module attributes {stable_mosaic.version = 11 : i64} {
  func.func @_bilstm_kernel(%arg0: memref<64x1xi32, #tpu.memory_space<vmem>>, %arg1: memref<128x128xf32, #tpu.memory_space<vmem>>, %arg2: memref<128x128xf32, #tpu.memory_space<vmem>>, %arg3: memref<1x128xf32, #tpu.memory_space<vmem>>, %arg4: memref<1x128xf32, #tpu.memory_space<vmem>>, %arg5: memref<32x128xf32, #tpu.memory_space<vmem>>, %arg6: memref<32x128xf32, #tpu.memory_space<vmem>>, %arg7: memref<32x128xf32, #tpu.memory_space<vmem>>, %arg8: memref<1x128xf32, #tpu.memory_space<vmem>>, %arg9: memref<8x128xf32, #tpu.memory_space<vmem>>) attributes {dimension_semantics = [], scalar_prefetch = 0 : i64, scratch_operands = 0 : i64, tpu.core_type = #tpu.core_type<tc>} {
    %c0 = arith.constant 0 : index
    %c0_0 = arith.constant 0 : index
    %0 = vector.load %arg0[%c0, %c0_0] : memref<64x1xi32, #tpu.memory_space<vmem>>, vector<64x1xi32>
    %1 = tpu.iota {dimensions = array<i32: 1>} : vector<64x128xi32>
    %2 = vector.broadcast %0 : vector<64x1xi32> to vector<64x128xi32>
    %3 = arith.cmpi eq, %2, %1 : vector<64x128xi32>
    %4 = arith.extui %3 : vector<64x128xi1> to vector<64x128xi32>
    %5 = arith.sitofp %4 : vector<64x128xi32> to vector<64x128xf32>
    %c0_1 = arith.constant 0 : index
    %c0_2 = arith.constant 0 : index
    %6 = vector.load %arg1[%c0_1, %c0_2] : memref<128x128xf32, #tpu.memory_space<vmem>>, vector<128x128xf32>
    %cst = arith.constant dense<0.000000e+00> : vector<64x128xf32>
    %7 = tpu.matmul %5, %6, %cst {dimension_numbers = #tpu.dot_dimension_numbers<[1], [0], [0], [1], [0, 0, 1, 1], [], []>} : vector<64x128xf32>, vector<128x128xf32>, vector<64x128xf32> -> vector<64x128xf32>
    %c0_3 = arith.constant 0 : index
    %c0_4 = arith.constant 0 : index
    %8 = vector.load %arg3[%c0_3, %c0_4] : memref<1x128xf32, #tpu.memory_space<vmem>>, vector<1x128xf32>
    %9 = vector.broadcast %8 : vector<1x128xf32> to vector<64x128xf32>
    %10 = arith.addf %7, %9 : vector<64x128xf32>
    %11 = vector.extract_strided_slice %5 {offsets = [56, 0], sizes = [8, 128], strides = [1, 1]} : vector<64x128xf32> to vector<8x128xf32>
    %c0_5 = arith.constant 0 : index
    %c0_6 = arith.constant 0 : index
    %12 = vector.load %arg2[%c0_5, %c0_6] : memref<128x128xf32, #tpu.memory_space<vmem>>, vector<128x128xf32>
    %cst_7 = arith.constant dense<0.000000e+00> : vector<8x128xf32>
    %13 = tpu.matmul %11, %12, %cst_7 {dimension_numbers = #tpu.dot_dimension_numbers<[1], [0], [0], [1], [0, 0, 1, 1], [], []>} : vector<8x128xf32>, vector<128x128xf32>, vector<8x128xf32> -> vector<8x128xf32>
    %c0_8 = arith.constant 0 : index
    %c0_9 = arith.constant 0 : index
    %14 = vector.load %arg4[%c0_8, %c0_9] : memref<1x128xf32, #tpu.memory_space<vmem>>, vector<1x128xf32>
    %15 = vector.broadcast %14 : vector<1x128xf32> to vector<8x128xf32>
    %16 = arith.addf %13, %15 : vector<8x128xf32>
    %c0_10 = arith.constant 0 : index
    %c0_11 = arith.constant 0 : index
    %17 = vector.load %arg5[%c0_10, %c0_11] : memref<32x128xf32, #tpu.memory_space<vmem>>, vector<32x128xf32>
    %cst_12 = arith.constant 0.000000e+00 : f32
    %18 = vector.broadcast %cst_12 : f32 to vector<8x32xf32>
    %cst_13 = arith.constant 0.000000e+00 : f32
    %19 = vector.broadcast %cst_13 : f32 to vector<8x32xf32>
    %20 = vector.extract_strided_slice %10 {offsets = [0, 0], sizes = [8, 128], strides = [1, 1]} : vector<64x128xf32> to vector<8x128xf32>
    %cst_14 = arith.constant dense<0.000000e+00> : vector<8x128xf32>
    %21 = tpu.matmul %18, %17, %cst_14 {dimension_numbers = #tpu.dot_dimension_numbers<[1], [0], [0], [1], [0, 0, 1, 1], [], []>} : vector<8x32xf32>, vector<32x128xf32>, vector<8x128xf32> -> vector<8x128xf32>
    %22 = arith.addf %20, %21 : vector<8x128xf32>
    %23 = arith.negf %22 : vector<8x128xf32>
    %24 = math.exp %23 : vector<8x128xf32>
    %cst_15 = arith.constant 1.000000e+00 : f32
    %25 = vector.broadcast %cst_15 : f32 to vector<8x128xf32>
    %26 = arith.addf %25, %24 : vector<8x128xf32>
    %27 = arith.divf %25, %26 : vector<8x128xf32>
    %28 = math.tanh %22 : vector<8x128xf32>
    %29 = vector.extract_strided_slice %27 {offsets = [0, 0], sizes = [8, 32], strides = [1, 1]} : vector<8x128xf32> to vector<8x32xf32>
    %30 = vector.extract_strided_slice %27 {offsets = [0, 32], sizes = [8, 32], strides = [1, 1]} : vector<8x128xf32> to vector<8x32xf32>
    %31 = vector.extract_strided_slice %28 {offsets = [0, 64], sizes = [8, 32], strides = [1, 1]} : vector<8x128xf32> to vector<8x32xf32>
    %32 = vector.extract_strided_slice %27 {offsets = [0, 96], sizes = [8, 32], strides = [1, 1]} : vector<8x128xf32> to vector<8x32xf32>
    %33 = arith.mulf %30, %19 : vector<8x32xf32>
    %34 = arith.mulf %29, %31 : vector<8x32xf32>
    %35 = arith.addf %33, %34 : vector<8x32xf32>
    %36 = math.tanh %35 : vector<8x32xf32>
    %37 = arith.mulf %32, %36 : vector<8x32xf32>
    %38 = vector.extract_strided_slice %10 {offsets = [8, 0], sizes = [8, 128], strides = [1, 1]} : vector<64x128xf32> to vector<8x128xf32>
    %cst_16 = arith.constant dense<0.000000e+00> : vector<8x128xf32>
    %39 = tpu.matmul %37, %17, %cst_16 {dimension_numbers = #tpu.dot_dimension_numbers<[1], [0], [0], [1], [0, 0, 1, 1], [], []>} : vector<8x32xf32>, vector<32x128xf32>, vector<8x128xf32> -> vector<8x128xf32>
    %40 = arith.addf %38, %39 : vector<8x128xf32>
    %41 = arith.negf %40 : vector<8x128xf32>
    %42 = math.exp %41 : vector<8x128xf32>
    %cst_17 = arith.constant 1.000000e+00 : f32
    %43 = vector.broadcast %cst_17 : f32 to vector<8x128xf32>
    %44 = arith.addf %43, %42 : vector<8x128xf32>
    %45 = arith.divf %43, %44 : vector<8x128xf32>
    %46 = math.tanh %40 : vector<8x128xf32>
    %47 = vector.extract_strided_slice %45 {offsets = [0, 0], sizes = [8, 32], strides = [1, 1]} : vector<8x128xf32> to vector<8x32xf32>
    %48 = vector.extract_strided_slice %45 {offsets = [0, 32], sizes = [8, 32], strides = [1, 1]} : vector<8x128xf32> to vector<8x32xf32>
    %49 = vector.extract_strided_slice %46 {offsets = [0, 64], sizes = [8, 32], strides = [1, 1]} : vector<8x128xf32> to vector<8x32xf32>
    %50 = vector.extract_strided_slice %45 {offsets = [0, 96], sizes = [8, 32], strides = [1, 1]} : vector<8x128xf32> to vector<8x32xf32>
    %51 = arith.mulf %48, %35 : vector<8x32xf32>
    %52 = arith.mulf %47, %49 : vector<8x32xf32>
    %53 = arith.addf %51, %52 : vector<8x32xf32>
    %54 = math.tanh %53 : vector<8x32xf32>
    %55 = arith.mulf %50, %54 : vector<8x32xf32>
    %56 = vector.extract_strided_slice %10 {offsets = [16, 0], sizes = [8, 128], strides = [1, 1]} : vector<64x128xf32> to vector<8x128xf32>
    %cst_18 = arith.constant dense<0.000000e+00> : vector<8x128xf32>
    %57 = tpu.matmul %55, %17, %cst_18 {dimension_numbers = #tpu.dot_dimension_numbers<[1], [0], [0], [1], [0, 0, 1, 1], [], []>} : vector<8x32xf32>, vector<32x128xf32>, vector<8x128xf32> -> vector<8x128xf32>
    %58 = arith.addf %56, %57 : vector<8x128xf32>
    %59 = arith.negf %58 : vector<8x128xf32>
    %60 = math.exp %59 : vector<8x128xf32>
    %cst_19 = arith.constant 1.000000e+00 : f32
    %61 = vector.broadcast %cst_19 : f32 to vector<8x128xf32>
    %62 = arith.addf %61, %60 : vector<8x128xf32>
    %63 = arith.divf %61, %62 : vector<8x128xf32>
    %64 = math.tanh %58 : vector<8x128xf32>
    %65 = vector.extract_strided_slice %63 {offsets = [0, 0], sizes = [8, 32], strides = [1, 1]} : vector<8x128xf32> to vector<8x32xf32>
    %66 = vector.extract_strided_slice %63 {offsets = [0, 32], sizes = [8, 32], strides = [1, 1]} : vector<8x128xf32> to vector<8x32xf32>
    %67 = vector.extract_strided_slice %64 {offsets = [0, 64], sizes = [8, 32], strides = [1, 1]} : vector<8x128xf32> to vector<8x32xf32>
    %68 = vector.extract_strided_slice %63 {offsets = [0, 96], sizes = [8, 32], strides = [1, 1]} : vector<8x128xf32> to vector<8x32xf32>
    %69 = arith.mulf %66, %53 : vector<8x32xf32>
    %70 = arith.mulf %65, %67 : vector<8x32xf32>
    %71 = arith.addf %69, %70 : vector<8x32xf32>
    %72 = math.tanh %71 : vector<8x32xf32>
    %73 = arith.mulf %68, %72 : vector<8x32xf32>
    %74 = vector.extract_strided_slice %10 {offsets = [24, 0], sizes = [8, 128], strides = [1, 1]} : vector<64x128xf32> to vector<8x128xf32>
    %cst_20 = arith.constant dense<0.000000e+00> : vector<8x128xf32>
    %75 = tpu.matmul %73, %17, %cst_20 {dimension_numbers = #tpu.dot_dimension_numbers<[1], [0], [0], [1], [0, 0, 1, 1], [], []>} : vector<8x32xf32>, vector<32x128xf32>, vector<8x128xf32> -> vector<8x128xf32>
    %76 = arith.addf %74, %75 : vector<8x128xf32>
    %77 = arith.negf %76 : vector<8x128xf32>
    %78 = math.exp %77 : vector<8x128xf32>
    %cst_21 = arith.constant 1.000000e+00 : f32
    %79 = vector.broadcast %cst_21 : f32 to vector<8x128xf32>
    %80 = arith.addf %79, %78 : vector<8x128xf32>
    %81 = arith.divf %79, %80 : vector<8x128xf32>
    %82 = math.tanh %76 : vector<8x128xf32>
    %83 = vector.extract_strided_slice %81 {offsets = [0, 0], sizes = [8, 32], strides = [1, 1]} : vector<8x128xf32> to vector<8x32xf32>
    %84 = vector.extract_strided_slice %81 {offsets = [0, 32], sizes = [8, 32], strides = [1, 1]} : vector<8x128xf32> to vector<8x32xf32>
    %85 = vector.extract_strided_slice %82 {offsets = [0, 64], sizes = [8, 32], strides = [1, 1]} : vector<8x128xf32> to vector<8x32xf32>
    %86 = vector.extract_strided_slice %81 {offsets = [0, 96], sizes = [8, 32], strides = [1, 1]} : vector<8x128xf32> to vector<8x32xf32>
    %87 = arith.mulf %84, %71 : vector<8x32xf32>
    %88 = arith.mulf %83, %85 : vector<8x32xf32>
    %89 = arith.addf %87, %88 : vector<8x32xf32>
    %90 = math.tanh %89 : vector<8x32xf32>
    %91 = arith.mulf %86, %90 : vector<8x32xf32>
    %92 = vector.extract_strided_slice %10 {offsets = [32, 0], sizes = [8, 128], strides = [1, 1]} : vector<64x128xf32> to vector<8x128xf32>
    %cst_22 = arith.constant dense<0.000000e+00> : vector<8x128xf32>
    %93 = tpu.matmul %91, %17, %cst_22 {dimension_numbers = #tpu.dot_dimension_numbers<[1], [0], [0], [1], [0, 0, 1, 1], [], []>} : vector<8x32xf32>, vector<32x128xf32>, vector<8x128xf32> -> vector<8x128xf32>
    %94 = arith.addf %92, %93 : vector<8x128xf32>
    %95 = arith.negf %94 : vector<8x128xf32>
    %96 = math.exp %95 : vector<8x128xf32>
    %cst_23 = arith.constant 1.000000e+00 : f32
    %97 = vector.broadcast %cst_23 : f32 to vector<8x128xf32>
    %98 = arith.addf %97, %96 : vector<8x128xf32>
    %99 = arith.divf %97, %98 : vector<8x128xf32>
    %100 = math.tanh %94 : vector<8x128xf32>
    %101 = vector.extract_strided_slice %99 {offsets = [0, 0], sizes = [8, 32], strides = [1, 1]} : vector<8x128xf32> to vector<8x32xf32>
    %102 = vector.extract_strided_slice %99 {offsets = [0, 32], sizes = [8, 32], strides = [1, 1]} : vector<8x128xf32> to vector<8x32xf32>
    %103 = vector.extract_strided_slice %100 {offsets = [0, 64], sizes = [8, 32], strides = [1, 1]} : vector<8x128xf32> to vector<8x32xf32>
    %104 = vector.extract_strided_slice %99 {offsets = [0, 96], sizes = [8, 32], strides = [1, 1]} : vector<8x128xf32> to vector<8x32xf32>
    %105 = arith.mulf %102, %89 : vector<8x32xf32>
    %106 = arith.mulf %101, %103 : vector<8x32xf32>
    %107 = arith.addf %105, %106 : vector<8x32xf32>
    %108 = math.tanh %107 : vector<8x32xf32>
    %109 = arith.mulf %104, %108 : vector<8x32xf32>
    %110 = vector.extract_strided_slice %10 {offsets = [40, 0], sizes = [8, 128], strides = [1, 1]} : vector<64x128xf32> to vector<8x128xf32>
    %cst_24 = arith.constant dense<0.000000e+00> : vector<8x128xf32>
    %111 = tpu.matmul %109, %17, %cst_24 {dimension_numbers = #tpu.dot_dimension_numbers<[1], [0], [0], [1], [0, 0, 1, 1], [], []>} : vector<8x32xf32>, vector<32x128xf32>, vector<8x128xf32> -> vector<8x128xf32>
    %112 = arith.addf %110, %111 : vector<8x128xf32>
    %113 = arith.negf %112 : vector<8x128xf32>
    %114 = math.exp %113 : vector<8x128xf32>
    %cst_25 = arith.constant 1.000000e+00 : f32
    %115 = vector.broadcast %cst_25 : f32 to vector<8x128xf32>
    %116 = arith.addf %115, %114 : vector<8x128xf32>
    %117 = arith.divf %115, %116 : vector<8x128xf32>
    %118 = math.tanh %112 : vector<8x128xf32>
    %119 = vector.extract_strided_slice %117 {offsets = [0, 0], sizes = [8, 32], strides = [1, 1]} : vector<8x128xf32> to vector<8x32xf32>
    %120 = vector.extract_strided_slice %117 {offsets = [0, 32], sizes = [8, 32], strides = [1, 1]} : vector<8x128xf32> to vector<8x32xf32>
    %121 = vector.extract_strided_slice %118 {offsets = [0, 64], sizes = [8, 32], strides = [1, 1]} : vector<8x128xf32> to vector<8x32xf32>
    %122 = vector.extract_strided_slice %117 {offsets = [0, 96], sizes = [8, 32], strides = [1, 1]} : vector<8x128xf32> to vector<8x32xf32>
    %123 = arith.mulf %120, %107 : vector<8x32xf32>
    %124 = arith.mulf %119, %121 : vector<8x32xf32>
    %125 = arith.addf %123, %124 : vector<8x32xf32>
    %126 = math.tanh %125 : vector<8x32xf32>
    %127 = arith.mulf %122, %126 : vector<8x32xf32>
    %128 = vector.extract_strided_slice %10 {offsets = [48, 0], sizes = [8, 128], strides = [1, 1]} : vector<64x128xf32> to vector<8x128xf32>
    %cst_26 = arith.constant dense<0.000000e+00> : vector<8x128xf32>
    %129 = tpu.matmul %127, %17, %cst_26 {dimension_numbers = #tpu.dot_dimension_numbers<[1], [0], [0], [1], [0, 0, 1, 1], [], []>} : vector<8x32xf32>, vector<32x128xf32>, vector<8x128xf32> -> vector<8x128xf32>
    %130 = arith.addf %128, %129 : vector<8x128xf32>
    %131 = arith.negf %130 : vector<8x128xf32>
    %132 = math.exp %131 : vector<8x128xf32>
    %cst_27 = arith.constant 1.000000e+00 : f32
    %133 = vector.broadcast %cst_27 : f32 to vector<8x128xf32>
    %134 = arith.addf %133, %132 : vector<8x128xf32>
    %135 = arith.divf %133, %134 : vector<8x128xf32>
    %136 = math.tanh %130 : vector<8x128xf32>
    %137 = vector.extract_strided_slice %135 {offsets = [0, 0], sizes = [8, 32], strides = [1, 1]} : vector<8x128xf32> to vector<8x32xf32>
    %138 = vector.extract_strided_slice %135 {offsets = [0, 32], sizes = [8, 32], strides = [1, 1]} : vector<8x128xf32> to vector<8x32xf32>
    %139 = vector.extract_strided_slice %136 {offsets = [0, 64], sizes = [8, 32], strides = [1, 1]} : vector<8x128xf32> to vector<8x32xf32>
    %140 = vector.extract_strided_slice %135 {offsets = [0, 96], sizes = [8, 32], strides = [1, 1]} : vector<8x128xf32> to vector<8x32xf32>
    %141 = arith.mulf %138, %125 : vector<8x32xf32>
    %142 = arith.mulf %137, %139 : vector<8x32xf32>
    %143 = arith.addf %141, %142 : vector<8x32xf32>
    %144 = math.tanh %143 : vector<8x32xf32>
    %145 = arith.mulf %140, %144 : vector<8x32xf32>
    %146 = vector.extract_strided_slice %10 {offsets = [56, 0], sizes = [8, 128], strides = [1, 1]} : vector<64x128xf32> to vector<8x128xf32>
    %cst_28 = arith.constant dense<0.000000e+00> : vector<8x128xf32>
    %147 = tpu.matmul %145, %17, %cst_28 {dimension_numbers = #tpu.dot_dimension_numbers<[1], [0], [0], [1], [0, 0, 1, 1], [], []>} : vector<8x32xf32>, vector<32x128xf32>, vector<8x128xf32> -> vector<8x128xf32>
    %148 = arith.addf %146, %147 : vector<8x128xf32>
    %149 = arith.negf %148 : vector<8x128xf32>
    %150 = math.exp %149 : vector<8x128xf32>
    %cst_29 = arith.constant 1.000000e+00 : f32
    %151 = vector.broadcast %cst_29 : f32 to vector<8x128xf32>
    %152 = arith.addf %151, %150 : vector<8x128xf32>
    %153 = arith.divf %151, %152 : vector<8x128xf32>
    %154 = math.tanh %148 : vector<8x128xf32>
    %155 = vector.extract_strided_slice %153 {offsets = [0, 0], sizes = [8, 32], strides = [1, 1]} : vector<8x128xf32> to vector<8x32xf32>
    %156 = vector.extract_strided_slice %153 {offsets = [0, 32], sizes = [8, 32], strides = [1, 1]} : vector<8x128xf32> to vector<8x32xf32>
    %157 = vector.extract_strided_slice %154 {offsets = [0, 64], sizes = [8, 32], strides = [1, 1]} : vector<8x128xf32> to vector<8x32xf32>
    %158 = vector.extract_strided_slice %153 {offsets = [0, 96], sizes = [8, 32], strides = [1, 1]} : vector<8x128xf32> to vector<8x32xf32>
    %159 = arith.mulf %156, %143 : vector<8x32xf32>
    %160 = arith.mulf %155, %157 : vector<8x32xf32>
    %161 = arith.addf %159, %160 : vector<8x32xf32>
    %162 = math.tanh %161 : vector<8x32xf32>
    %163 = arith.mulf %158, %162 : vector<8x32xf32>
    %164 = arith.negf %16 : vector<8x128xf32>
    %165 = math.exp %164 : vector<8x128xf32>
    %cst_30 = arith.constant 1.000000e+00 : f32
    %166 = vector.broadcast %cst_30 : f32 to vector<8x128xf32>
    %167 = arith.addf %166, %165 : vector<8x128xf32>
    %168 = arith.divf %166, %167 : vector<8x128xf32>
    %169 = math.tanh %16 : vector<8x128xf32>
    %170 = vector.extract_strided_slice %168 {offsets = [0, 0], sizes = [8, 32], strides = [1, 1]} : vector<8x128xf32> to vector<8x32xf32>
    %171 = vector.extract_strided_slice %169 {offsets = [0, 64], sizes = [8, 32], strides = [1, 1]} : vector<8x128xf32> to vector<8x32xf32>
    %172 = arith.mulf %170, %171 : vector<8x32xf32>
    %173 = vector.extract_strided_slice %168 {offsets = [0, 96], sizes = [8, 32], strides = [1, 1]} : vector<8x128xf32> to vector<8x32xf32>
    %174 = math.tanh %172 : vector<8x32xf32>
    %175 = arith.mulf %173, %174 : vector<8x32xf32>
    %c0_31 = arith.constant 0 : index
    %c0_32 = arith.constant 0 : index
    %176 = vector.load %arg6[%c0_31, %c0_32] : memref<32x128xf32, #tpu.memory_space<vmem>>, vector<32x128xf32>
    %cst_33 = arith.constant dense<0.000000e+00> : vector<8x128xf32>
    %177 = tpu.matmul %163, %176, %cst_33 {dimension_numbers = #tpu.dot_dimension_numbers<[1], [0], [0], [1], [0, 0, 1, 1], [], []>} : vector<8x32xf32>, vector<32x128xf32>, vector<8x128xf32> -> vector<8x128xf32>
    %c0_34 = arith.constant 0 : index
    %c0_35 = arith.constant 0 : index
    %178 = vector.load %arg7[%c0_34, %c0_35] : memref<32x128xf32, #tpu.memory_space<vmem>>, vector<32x128xf32>
    %cst_36 = arith.constant dense<0.000000e+00> : vector<8x128xf32>
    %179 = tpu.matmul %175, %178, %cst_36 {dimension_numbers = #tpu.dot_dimension_numbers<[1], [0], [0], [1], [0, 0, 1, 1], [], []>} : vector<8x32xf32>, vector<32x128xf32>, vector<8x128xf32> -> vector<8x128xf32>
    %180 = arith.addf %177, %179 : vector<8x128xf32>
    %c0_37 = arith.constant 0 : index
    %c0_38 = arith.constant 0 : index
    %181 = vector.load %arg8[%c0_37, %c0_38] : memref<1x128xf32, #tpu.memory_space<vmem>>, vector<1x128xf32>
    %182 = vector.broadcast %181 : vector<1x128xf32> to vector<8x128xf32>
    %183 = arith.addf %180, %182 : vector<8x128xf32>
    %c0_39 = arith.constant 0 : index
    %c0_40 = arith.constant 0 : index
    %184 = vector.load %arg9[%c0_39, %c0_40] : memref<8x128xf32, #tpu.memory_space<vmem>>, vector<8x128xf32>
    tpu.vector_store %arg9[%c0_39, %c0_40], %183 {strides = array<i32>} : memref<8x128xf32, #tpu.memory_space<vmem>>, vector<8x128xf32>,
    return
  }
}

</mosaic_0001>

<llo_original>
// kernel: tpu_custom_call.1
$region0: #{tpu_custom_call.1}
  #allocation0 [shape = 'u32[]', space=smem, size = 0x4, offset = 0x4, fixed_abs, tag = 'smem constant byte address 0x4 - core index']
  #allocation1 [shape = 'u32[144,128]{1,0:T(1,128)}', space=vmem, size = 0x12000, scoped, tag = 'internal scratch']
  %s0 = inlined_call_operand.vmem [shape: s32[64,1], index: 0, kind: input, shape index: {}]
  %s1 = inlined_call_operand.hbm [shape: f32[128,128], index: 1, kind: input, shape index: {}]
  %s2 = inlined_call_operand.hbm [shape: f32[128,128], index: 2, kind: input, shape index: {}]
  %s3 = inlined_call_operand.vmem [shape: f32[1,128], index: 3, kind: input, shape index: {}]
  %s4 = inlined_call_operand.vmem [shape: f32[1,128], index: 4, kind: input, shape index: {}]
  %s5 = inlined_call_operand.vmem [shape: f32[32,128], index: 5, kind: input, shape index: {}]
  %s6 = inlined_call_operand.vmem [shape: f32[32,128], index: 6, kind: input, shape index: {}]
  %s7 = inlined_call_operand.hbm [shape: f32[32,128], index: 7, kind: input, shape index: {}]
  %s8 = inlined_call_operand.vmem [shape: f32[1,128], index: 8, kind: input, shape index: {}]
  %s9 = inlined_call_operand.hbm [shape: f32[8,128], index: 9, kind: output, shape index: {}]
  %s10 = sld [smem:[#allocation0]]
  $region58: #{tpu_custom_call.1} parent=0
    _
  %s12 = ssub.s32 1, %s10
  %s13 = scalar_select 0, %s12, %s10
  $region1: #{tpu_custom_call.1} parent=0
    #allocation2 [shape = 'u8[65536]{0}', space=vmem, size = 0x10000, scoped, tag = 'input window, operand 1, single buffered']
    #allocation3 [shape = 's32[1]{0}', space=sflag, size = 0x4, scoped, tag = 'scoped memory for tpu_custom_call.1']
    #allocation4 [shape = 's32[1]{0}', space=sflag, size = 0x4, scoped, tag = 'scoped memory for tpu_custom_call.1']
    #allocation5 [shape = 'u8[65536]{0}', space=vmem, size = 0x10000, scoped, tag = 'input window, operand 2, single buffered']
    #allocation6 [shape = 's32[1]{0}', space=sflag, size = 0x4, scoped, tag = 'scoped memory for tpu_custom_call.1']
    #allocation7 [shape = 'u8[16384]{0}', space=vmem, size = 0x4000, scoped, tag = 'input window, operand 7, single buffered']
    #allocation8 [shape = 'u8[4096]{0}', space=vmem, size = 0x1000, scoped, tag = 'output window, operand 0, single buffered']
    %14 = vsyncpa [#allocation3], 0
    %15 = vsyncpa [#allocation6], 0
    %16 = vsyncpa [#allocation4], 0
    // Predicated region
    $region2: #{tpu_custom_call.1} parent=1 // pred_check
      _
    $region3: #{tpu_custom_call.1} parent=1 // pred_check_branch
      %18 = sbr.rel (0) target = $region5
    $region4: #{tpu_custom_call.1} parent=1 // pred_region
      _
    $region5: #{tpu_custom_call.1} parent=1 // pred_fallthru
      _
    // Predicated region
    $region6: #{tpu_custom_call.1} parent=1 // pred_check
      _
    $region7: #{tpu_custom_call.1} parent=1 // pred_check_branch
      %20 = sbr.rel (0) target = $region9
    $region8: #{tpu_custom_call.1} parent=1 // pred_region
      %s22 = ssub.s32 2048, 2048
      %23 = vsyncadd [#allocation3], %s22
      %s24 = sshll.u32 [#allocation2], 4
      %s25 = int_to_ptr.vmem [resolvable:$true] %s24
      %30 = dma.hbm_to_vmem [thread:$0]  %s1, 2048, %s25, [#allocation3], 128, 128, 8
    $region9: #{tpu_custom_call.1} parent=1 // pred_fallthru
      _
    // Predicated region
    $region10: #{tpu_custom_call.1} parent=1 // pred_check
      _
    $region11: #{tpu_custom_call.1} parent=1 // pred_check_branch
      %32 = sbr.rel (0) target = $region13
    $region12: #{tpu_custom_call.1} parent=1 // pred_region
      %s34 = ssub.s32 2048, 2048
      %35 = vsyncadd [#allocation6], %s34
      %s36 = sshll.u32 [#allocation5], 4
      %s37 = int_to_ptr.vmem [resolvable:$true] %s36
      %42 = dma.hbm_to_vmem [thread:$0]  %s2, 2048, %s37, [#allocation6], 128, 128, 8
    $region13: #{tpu_custom_call.1} parent=1 // pred_fallthru
      _
    // Predicated region
    $region14: #{tpu_custom_call.1} parent=1 // pred_check
      _
    $region15: #{tpu_custom_call.1} parent=1 // pred_check_branch
      %44 = sbr.rel (0) target = $region17
    $region16: #{tpu_custom_call.1} parent=1 // pred_region
      _
    $region17: #{tpu_custom_call.1} parent=1 // pred_fallthru
      _
    // Predicated region
    $region18: #{tpu_custom_call.1} parent=1 // pred_check
      _
    $region19: #{tpu_custom_call.1} parent=1 // pred_check_branch
      %46 = sbr.rel (0) target = $region21
    $region20: #{tpu_custom_call.1} parent=1 // pred_region
      _
    $region21: #{tpu_custom_call.1} parent=1 // pred_fallthru
      _
    // Predicated region
    $region22: #{tpu_custom_call.1} parent=1 // pred_check
      _
    $region23: #{tpu_custom_call.1} parent=1 // pred_check_branch
      %48 = sbr.rel (0) target = $region25
    $region24: #{tpu_custom_call.1} parent=1 // pred_region
      _
    $region25: #{tpu_custom_call.1} parent=1 // pred_fallthru
      _
    // Predicated region
    $region26: #{tpu_custom_call.1} parent=1 // pred_check
      _
    $region27: #{tpu_custom_call.1} parent=1 // pred_check_branch
      %50 = sbr.rel (0) target = $region29
    $region28: #{tpu_custom_call.1} parent=1 // pred_region
      _
    $region29: #{tpu_custom_call.1} parent=1 // pred_fallthru
      _
    // Predicated region
    $region30: #{tpu_custom_call.1} parent=1 // pred_check
      _
    $region31: #{tpu_custom_call.1} parent=1 // pred_check_branch
      %52 = sbr.rel (0) target = $region33
    $region32: #{tpu_custom_call.1} parent=1 // pred_region
      %s54 = ssub.s32 512, 512
      %55 = vsyncadd [#allocation6], %s54
      %s56 = sshll.u32 [#allocation7], 4
      %s57 = int_to_ptr.vmem [resolvable:$true] %s56
      %62 = dma.hbm_to_vmem [thread:$0]  %s7, 512, %s57, [#allocation6], 128, 128, 8
    $region33: #{tpu_custom_call.1} parent=1 // pred_fallthru
      _
    // Predicated region
    $region34: #{tpu_custom_call.1} parent=1 // pred_check
      _
    $region35: #{tpu_custom_call.1} parent=1 // pred_check_branch
      %64 = sbr.rel (0) target = $region37
    $region36: #{tpu_custom_call.1} parent=1 // pred_region
      _
    $region37: #{tpu_custom_call.1} parent=1 // pred_fallthru
      _
    // Predicated region
    $region38: #{tpu_custom_call.1} parent=1 // pred_check
      _
    $region39: #{tpu_custom_call.1} parent=1 // pred_check_branch
      %66 = sbr.rel (0) target = $region41
    $region40: #{tpu_custom_call.1} parent=1 // pred_region
      %67 = dma.done [#allocation3], 2048
    $region41: #{tpu_custom_call.1} parent=1 // pred_fallthru
      _
    // Predicated region
    $region42: #{tpu_custom_call.1} parent=1 // pred_check
      _
    $region43: #{tpu_custom_call.1} parent=1 // pred_check_branch
      %69 = sbr.rel (0) target = $region45
    $region44: #{tpu_custom_call.1} parent=1 // pred_region
      %70 = dma.done [#allocation6], 2048
    $region45: #{tpu_custom_call.1} parent=1 // pred_fallthru
      _
    // Predicated region
    $region46: #{tpu_custom_call.1} parent=1 // pred_check
      _
    $region47: #{tpu_custom_call.1} parent=1 // pred_check_branch
      %72 = sbr.rel (0) target = $region49
    $region48: #{tpu_custom_call.1} parent=1 // pred_region
      %73 = dma.done [#allocation6], 512
    $region49: #{tpu_custom_call.1} parent=1 // pred_fallthru
      _
    %v74 = vld [vmem:[%s0] sm:$0xff]
    %v75 = vld [vmem:[%s0 + $0x8] sm:$0xff]
    %v76 = vld [vmem:[%s0 + $0x10] sm:$0xff]
    %v77 = vld [vmem:[%s0 + $0x18] sm:$0xff]
    %v78 = vld [vmem:[%s0 + $0x20] sm:$0xff]
    %v79 = vld [vmem:[%s0 + $0x28] sm:$0xff]
    %v80 = vld [vmem:[%s0 + $0x30] sm:$0xff]
    %v81 = vld [vmem:[%s0 + $0x38] sm:$0xff]
    %v82 = vlaneseq
    %v83 = vand.u32 %v82, 127
    %84 = vset.pattern.permute.xlu0 0
    %85 = vperm.xlu0 %84, %v74
    %v86 = vpop.permute.xlu0 %85
    %87 = vset.pattern.permute.xlu0 0
    %88 = vperm.xlu0 %87, %v75
    %v89 = vpop.permute.xlu0 %88
    %90 = vset.pattern.permute.xlu0 0
    %91 = vperm.xlu0 %90, %v76
    %v92 = vpop.permute.xlu0 %91
    %93 = vset.pattern.permute.xlu0 0
    %94 = vperm.xlu0 %93, %v77
    %v95 = vpop.permute.xlu0 %94
    %96 = vset.pattern.permute.xlu0 0
    %97 = vperm.xlu0 %96, %v78
    %v98 = vpop.permute.xlu0 %97
    %99 = vset.pattern.permute.xlu0 0
    %100 = vperm.xlu0 %99, %v79
    %v101 = vpop.permute.xlu0 %100
    %102 = vset.pattern.permute.xlu0 0
    %103 = vperm.xlu0 %102, %v80
    %v104 = vpop.permute.xlu0 %103
    %105 = vset.pattern.permute.xlu0 0
    %106 = vperm.xlu0 %105, %v81
    %v107 = vpop.permute.xlu0 %106
    %vm108 = vcmp.eq.s32.totalorder %v86, %v83
    %vm109 = vcmp.eq.s32.totalorder %v89, %v83
    %vm110 = vcmp.eq.s32.totalorder %v92, %v83
    %vm111 = vcmp.eq.s32.totalorder %v95, %v83
    %vm112 = vcmp.eq.s32.totalorder %v98, %v83
    %vm113 = vcmp.eq.s32.totalorder %v101, %v83
    %vm114 = vcmp.eq.s32.totalorder %v104, %v83
    %vm115 = vcmp.eq.s32.totalorder %v107, %v83
    %v116 = vsel %vm108, 1, 0
    %v117 = vsel %vm109, 1, 0
    %v118 = vsel %vm110, 1, 0
    %v119 = vsel %vm111, 1, 0
    %v120 = vsel %vm112, 1, 0
    %v121 = vsel %vm113, 1, 0
    %v122 = vsel %vm114, 1, 0
    %v123 = vsel %vm115, 1, 0
    %v124 = vcvt.s32.f32 %v116
    %v125 = vcvt.s32.f32 %v117
    %v126 = vcvt.s32.f32 %v118
    %v127 = vcvt.s32.f32 %v119
    %v128 = vcvt.s32.f32 %v120
    %v129 = vcvt.s32.f32 %v121
    %v130 = vcvt.s32.f32 %v122
    %v131 = vcvt.s32.f32 %v123
    %v132 = vld [vmem:[#allocation2] sm:$0xff]
    %v133 = vld [vmem:[#allocation2 + $0x8] sm:$0xff]
    %v134 = vld [vmem:[#allocation2 + $0x10] sm:$0xff]
    %v135 = vld [vmem:[#allocation2 + $0x18] sm:$0xff]
    %v136 = vld [vmem:[#allocation2 + $0x20] sm:$0xff]
    %v137 = vld [vmem:[#allocation2 + $0x28] sm:$0xff]
    %v138 = vld [vmem:[#allocation2 + $0x30] sm:$0xff]
    %v139 = vld [vmem:[#allocation2 + $0x38] sm:$0xff]
    %v140 = vld [vmem:[#allocation2 + $0x40] sm:$0xff]
    %v141 = vld [vmem:[#allocation2 + $0x48] sm:$0xff]
    %v142 = vld [vmem:[#allocation2 + $0x50] sm:$0xff]
    %v143 = vld [vmem:[#allocation2 + $0x58] sm:$0xff]
    %v144 = vld [vmem:[#allocation2 + $0x60] sm:$0xff]
    %v145 = vld [vmem:[#allocation2 + $0x68] sm:$0xff]
    %v146 = vld [vmem:[#allocation2 + $0x70] sm:$0xff]
    %v147 = vld [vmem:[#allocation2 + $0x78] sm:$0xff]
    %v148 = vld [vmem:[%s3] sm:$0x1]
    %v150 = vlaneseq
    %v151 = vshrl.u32 %v150, 7
    %v152 = vsub.s32 0, %v151
    %v153 = vrot.slane %v148, %v152
    %155 = vmatprep.subr.mxu0 0.0
    %156 = vmatpush1.msra.mxu0 %v132
    %157 = vmatprep.subr.mxu0 0.0
    %158 = vmatpush1.msra.mxu0 %v133
    %159 = vmatprep.subr.mxu0 0.0
    %160 = vmatpush1.msra.mxu0 %v134
    %161 = vmatprep.subr.mxu0 0.0
    %162 = vmatpush1.msra.mxu0 %v135
    %163 = vmatprep.subr.mxu0 0.0
    %164 = vmatpush1.msra.mxu0 %v136
    %165 = vmatprep.subr.mxu0 0.0
    %166 = vmatpush1.msra.mxu0 %v137
    %167 = vmatprep.subr.mxu0 0.0
    %168 = vmatpush1.msra.mxu0 %v138
    %169 = vmatprep.subr.mxu0 0.0
    %170 = vmatpush1.msra.mxu0 %v139
    %171 = vmatprep.subr.mxu0 0.0
    %172 = vmatpush1.msra.mxu0 %v140
    %173 = vmatprep.subr.mxu0 0.0
    %174 = vmatpush1.msra.mxu0 %v141
    %175 = vmatprep.subr.mxu0 0.0
    %176 = vmatpush1.msra.mxu0 %v142
    %177 = vmatprep.subr.mxu0 0.0
    %178 = vmatpush1.msra.mxu0 %v143
    %179 = vmatprep.subr.mxu0 0.0
    %180 = vmatpush1.msra.mxu0 %v144
    %181 = vmatprep.subr.mxu0 0.0
    %182 = vmatpush1.msra.mxu0 %v145
    %183 = vmatprep.subr.mxu0 0.0
    %184 = vmatpush1.msra.mxu0 %v146
    %185 = vmatprep.subr.mxu0 0.0
    %186 = vmatpush1.msra.mxu0 %v147
    %187 = vmatprep.subr.mxu0 0.0
    %188 = vmatpush1.msra.mxu0 0.0
    %189 = vmatprep.subr.mxu0 0.0
    %190 = vmatpush1.msra.mxu0 0.0
    %191 = vmatprep.subr.mxu0 0.0
    %192 = vmatpush1.msra.mxu0 0.0
    %193 = vmatprep.subr.mxu0 0.0
    %194 = vmatpush1.msra.mxu0 0.0
    %195 = vmatprep.subr.mxu0 0.0
    %196 = vmatpush1.msra.mxu0 0.0
    %197 = vmatprep.subr.mxu0 0.0
    %198 = vmatpush1.msra.mxu0 0.0
    %199 = vmatprep.subr.mxu0 0.0
    %200 = vmatpush1.msra.mxu0 0.0
    %201 = vmatprep.subr.mxu0 0.0
    %202 = vmatpush1.msra.mxu0 0.0
    %203 = vmatprep.subr.mxu0 0.0
    %204 = vmatpush1.msra.mxu0 0.0
    %205 = vmatprep.subr.mxu0 0.0
    %206 = vmatpush1.msra.mxu0 0.0
    %207 = vmatprep.subr.mxu0 0.0
    %208 = vmatpush1.msra.mxu0 0.0
    %209 = vmatprep.subr.mxu0 0.0
    %210 = vmatpush1.msra.mxu0 0.0
    %211 = vmatprep.subr.mxu0 0.0
    %212 = vmatpush1.msra.mxu0 0.0
    %213 = vmatprep.subr.mxu0 0.0
    %214 = vmatpush1.msra.mxu0 0.0
    %215 = vmatprep.subr.mxu0 0.0
    %216 = vmatpush1.msra.mxu0 0.0
    %217 = vmatprep.subr.mxu0 0.0
    %218 = vmatpush1.msra.mxu0 0.0
    %219 = vmatprep.mubr.f32.mxu0 0.0
    %220 = vmatmul.mubr.f32.gmra.mrb[0].mxu0 %v124
    %v221 = vpop.f32.mrb[0].mxu0
    %v222 = vadd.f32 %v153, %v221
    %v223 = vpop.f32.mrb[0].mxu0
    %224 = vmatprep.mubr.f32.mxu0 0.0
    %225 = vmatmul.mubr.f32.gmra.mrb[0].mxu0 %v125
    %v226 = vpop.f32.mrb[0].mxu0
    %v227 = vadd.f32 %v153, %v226
    %v228 = vpop.f32.mrb[0].mxu0
    %229 = vmatprep.mubr.f32.mxu0 0.0
    %230 = vmatmul.mubr.f32.gmra.mrb[0].mxu0 %v126
    %v231 = vpop.f32.mrb[0].mxu0
    %v232 = vadd.f32 %v153, %v231
    %v233 = vpop.f32.mrb[0].mxu0
    %234 = vmatprep.mubr.f32.mxu0 0.0
    %235 = vmatmul.mubr.f32.gmra.mrb[0].mxu0 %v127
    %v236 = vpop.f32.mrb[0].mxu0
    %v237 = vadd.f32 %v153, %v236
    %v238 = vpop.f32.mrb[0].mxu0
    %239 = vmatprep.mubr.f32.mxu0 0.0
    %240 = vmatmul.mubr.f32.gmra.mrb[0].mxu0 %v128
    %v241 = vpop.f32.mrb[0].mxu0
    %v242 = vadd.f32 %v153, %v241
    %v243 = vpop.f32.mrb[0].mxu0
    %244 = vmatprep.mubr.f32.mxu0 0.0
    %245 = vmatmul.mubr.f32.gmra.mrb[0].mxu0 %v129
    %v246 = vpop.f32.mrb[0].mxu0
    %v247 = vadd.f32 %v153, %v246
    %v248 = vpop.f32.mrb[0].mxu0
    %249 = vmatprep.mubr.f32.mxu0 0.0
    %250 = vmatmul.mubr.f32.gmra.mrb[0].mxu0 %v130
    %v251 = vpop.f32.mrb[0].mxu0
    %v252 = vadd.f32 %v153, %v251
    %v253 = vpop.f32.mrb[0].mxu0
    %254 = vmatprep.mubr.f32.mxu0 0.0
    %255 = vmatmul.mubr.f32.gmra.mrb[0].mxu0 %v131
    %v256 = vpop.f32.mrb[0].mxu0
    %v257 = vadd.f32 %v153, %v256
    %v258 = vpop.f32.mrb[0].mxu0
    %259 = vdwg.mxu0
    %v260 = vld [vmem:[#allocation5] sm:$0xff]
    %v261 = vld [vmem:[#allocation5 + $0x8] sm:$0xff]
    %v262 = vld [vmem:[#allocation5 + $0x10] sm:$0xff]
    %v263 = vld [vmem:[#allocation5 + $0x18] sm:$0xff]
    %v264 = vld [vmem:[#allocation5 + $0x20] sm:$0xff]
    %v265 = vld [vmem:[#allocation5 + $0x28] sm:$0xff]
    %v266 = vld [vmem:[#allocation5 + $0x30] sm:$0xff]
    %v267 = vld [vmem:[#allocation5 + $0x38] sm:$0xff]
    %v268 = vld [vmem:[#allocation5 + $0x40] sm:$0xff]
    %v269 = vld [vmem:[#allocation5 + $0x48] sm:$0xff]
    %v270 = vld [vmem:[#allocation5 + $0x50] sm:$0xff]
    %v271 = vld [vmem:[#allocation5 + $0x58] sm:$0xff]
    %v272 = vld [vmem:[#allocation5 + $0x60] sm:$0xff]
    %v273 = vld [vmem:[#allocation5 + $0x68] sm:$0xff]
    %v274 = vld [vmem:[#allocation5 + $0x70] sm:$0xff]
    %v275 = vld [vmem:[#allocation5 + $0x78] sm:$0xff]
    %v276 = vld [vmem:[%s4] sm:$0x1]
    %v278 = vlaneseq
    %v279 = vshrl.u32 %v278, 7
    %v280 = vsub.s32 0, %v279
    %v281 = vrot.slane %v276, %v280
    %283 = vmatprep.subr.mxu0 0.0
    %284 = vmatpush1.msra.mxu0 %v260
    %285 = vmatprep.subr.mxu0 0.0
    %286 = vmatpush1.msra.mxu0 %v261
    %287 = vmatprep.subr.mxu0 0.0
    %288 = vmatpush1.msra.mxu0 %v262
    %289 = vmatprep.subr.mxu0 0.0
    %290 = vmatpush1.msra.mxu0 %v263
    %291 = vmatprep.subr.mxu0 0.0
    %292 = vmatpush1.msra.mxu0 %v264
    %293 = vmatprep.subr.mxu0 0.0
    %294 = vmatpush1.msra.mxu0 %v265
    %295 = vmatprep.subr.mxu0 0.0
    %296 = vmatpush1.msra.mxu0 %v266
    %297 = vmatprep.subr.mxu0 0.0
    %298 = vmatpush1.msra.mxu0 %v267
    %299 = vmatprep.subr.mxu0 0.0
    %300 = vmatpush1.msra.mxu0 %v268
    %301 = vmatprep.subr.mxu0 0.0
    %302 = vmatpush1.msra.mxu0 %v269
    %303 = vmatprep.subr.mxu0 0.0
    %304 = vmatpush1.msra.mxu0 %v270
    %305 = vmatprep.subr.mxu0 0.0
    %306 = vmatpush1.msra.mxu0 %v271
    %307 = vmatprep.subr.mxu0 0.0
    %308 = vmatpush1.msra.mxu0 %v272
    %309 = vmatprep.subr.mxu0 0.0
    %310 = vmatpush1.msra.mxu0 %v273
    %311 = vmatprep.subr.mxu0 0.0
    %312 = vmatpush1.msra.mxu0 %v274
    %313 = vmatprep.subr.mxu0 0.0
    %314 = vmatpush1.msra.mxu0 %v275
    %315 = vmatprep.subr.mxu0 0.0
    %316 = vmatpush1.msra.mxu0 0.0
    %317 = vmatprep.subr.mxu0 0.0
    %318 = vmatpush1.msra.mxu0 0.0
    %319 = vmatprep.subr.mxu0 0.0
    %320 = vmatpush1.msra.mxu0 0.0
    %321 = vmatprep.subr.mxu0 0.0
    %322 = vmatpush1.msra.mxu0 0.0
    %323 = vmatprep.subr.mxu0 0.0
    %324 = vmatpush1.msra.mxu0 0.0
    %325 = vmatprep.subr.mxu0 0.0
    %326 = vmatpush1.msra.mxu0 0.0
    %327 = vmatprep.subr.mxu0 0.0
    %328 = vmatpush1.msra.mxu0 0.0
    %329 = vmatprep.subr.mxu0 0.0
    %330 = vmatpush1.msra.mxu0 0.0
    %331 = vmatprep.subr.mxu0 0.0
    %332 = vmatpush1.msra.mxu0 0.0
    %333 = vmatprep.subr.mxu0 0.0
    %334 = vmatpush1.msra.mxu0 0.0
    %335 = vmatprep.subr.mxu0 0.0
    %336 = vmatpush1.msra.mxu0 0.0
    %337 = vmatprep.subr.mxu0 0.0
    %338 = vmatpush1.msra.mxu0 0.0
    %339 = vmatprep.subr.mxu0 0.0
    %340 = vmatpush1.msra.mxu0 0.0
    %341 = vmatprep.subr.mxu0 0.0
    %342 = vmatpush1.msra.mxu0 0.0
    %343 = vmatprep.subr.mxu0 0.0
    %344 = vmatpush1.msra.mxu0 0.0
    %345 = vmatprep.subr.mxu0 0.0
    %346 = vmatpush1.msra.mxu0 0.0
    %347 = vmatprep.mubr.f32.mxu0 0.0
    %348 = vmatmul.mubr.f32.gmra.mrb[0].mxu0 %v131
    %v349 = vpop.f32.mrb[0].mxu0
    %v350 = vadd.f32 %v281, %v349
    %v351 = vpop.f32.mrb[0].mxu0
    %352 = vdwg.mxu0
    %v353 = vld [vmem:[%s5] sm:$0xff]
    %v354 = vld [vmem:[%s5 + $0x8] sm:$0xff]
    %v355 = vld [vmem:[%s5 + $0x10] sm:$0xff]
    %v356 = vld [vmem:[%s5 + $0x18] sm:$0xff]
    %vm357 = vcmask 261120
    %v359 = vsel %vm357, 0.0, 0
    %361 = vmatprep.subr.mxu0 0.0
    %362 = vmatpush1.msra.mxu0 %v353
    %363 = vmatprep.subr.mxu0 0.0
    %364 = vmatpush1.msra.mxu0 %v354
    %365 = vmatprep.subr.mxu0 0.0
    %366 = vmatpush1.msra.mxu0 %v355
    %367 = vmatprep.subr.mxu0 0.0
    %368 = vmatpush1.msra.mxu0 %v356
    %369 = vmatprep.subr.mxu0 0.0
    %370 = vmatpush1.msra.mxu0 0.0
    %371 = vmatprep.subr.mxu0 0.0
    %372 = vmatpush1.msra.mxu0 0.0
    %373 = vmatprep.subr.mxu0 0.0
    %374 = vmatpush1.msra.mxu0 0.0
    %375 = vmatprep.subr.mxu0 0.0
    %376 = vmatpush1.msra.mxu0 0.0
    %377 = vmatprep.subr.mxu0 0.0
    %378 = vmatpush1.msra.mxu0 0.0
    %379 = vmatprep.subr.mxu0 0.0
    %380 = vmatpush1.msra.mxu0 0.0
    %381 = vmatprep.subr.mxu0 0.0
    %382 = vmatpush1.msra.mxu0 0.0
    %383 = vmatprep.subr.mxu0 0.0
    %384 = vmatpush1.msra.mxu0 0.0
    %385 = vmatprep.subr.mxu0 0.0
    %386 = vmatpush1.msra.mxu0 0.0
    %387 = vmatprep.subr.mxu0 0.0
    %388 = vmatpush1.msra.mxu0 0.0
    %389 = vmatprep.subr.mxu0 0.0
    %390 = vmatpush1.msra.mxu0 0.0
    %391 = vmatprep.subr.mxu0 0.0
    %392 = vmatpush1.msra.mxu0 0.0
    %393 = vmatprep.subr.mxu0 0.0
    %394 = vmatpush1.msra.mxu0 0.0
    %395 = vmatprep.subr.mxu0 0.0
    %396 = vmatpush1.msra.mxu0 0.0
    %397 = vmatprep.subr.mxu0 0.0
    %398 = vmatpush1.msra.mxu0 0.0
    %399 = vmatprep.subr.mxu0 0.0
    %400 = vmatpush1.msra.mxu0 0.0
    %401 = vmatprep.subr.mxu0 0.0
    %402 = vmatpush1.msra.mxu0 0.0
    %403 = vmatprep.subr.mxu0 0.0
    %404 = vmatpush1.msra.mxu0 0.0
    %405 = vmatprep.subr.mxu0 0.0
    %406 = vmatpush1.msra.mxu0 0.0
    %407 = vmatprep.subr.mxu0 0.0
    %408 = vmatpush1.msra.mxu0 0.0
    %409 = vmatprep.subr.mxu0 0.0
    %410 = vmatpush1.msra.mxu0 0.0
    %411 = vmatprep.subr.mxu0 0.0
    %412 = vmatpush1.msra.mxu0 0.0
    %413 = vmatprep.subr.mxu0 0.0
    %414 = vmatpush1.msra.mxu0 0.0
    %415 = vmatprep.subr.mxu0 0.0
    %416 = vmatpush1.msra.mxu0 0.0
    %417 = vmatprep.subr.mxu0 0.0
    %418 = vmatpush1.msra.mxu0 0.0
    %419 = vmatprep.subr.mxu0 0.0
    %420 = vmatpush1.msra.mxu0 0.0
    %421 = vmatprep.subr.mxu0 0.0
    %422 = vmatpush1.msra.mxu0 0.0
    %423 = vmatprep.subr.mxu0 0.0
    %424 = vmatpush1.msra.mxu0 0.0
    %425 = vmatprep.mubr.f32.mxu0 0.0
    %426 = vmatmul.mubr.f32.gmra.mrb[0].mxu0 %v359
    %v427 = vpop.f32.mrb[0].mxu0
    %v428 = vadd.f32 0.0, %v427
    %v429 = vpop.f32.mrb[0].mxu0
    %430 = vdwg.mxu0
    %v431 = vadd.f32 %v222, %v428
    %v432 = vxor.u32 %v431, 2147483648
    %v433 = vmul.f32 %v432, 1.442695
    %v434 = vpow.pop %v433
    %v435 = vadd.f32 %v434, 1.0
    %v436 = vrcp.pop %v435
    %v437 = vmul.f32 1.0, %v436
    %v438 = vtanh.pop %v431
    %v439 = vmul.f32 %v437, 0.0
    %441 = vrot.lane.b32.xlu0 %v438, 64
    %v442 = vpop.permute.xlu0 %441
    %v444 = vmul.f32 %v437, %v442
    %446 = vrot.lane.b32.xlu0 %v444, 32
    %v447 = vpop.permute.xlu0 %446
    %v449 = vadd.f32 %v439, %v447
    %v450 = vtanh.pop %v449
    %452 = vrot.lane.b32.xlu0 %v450, 64
    %v453 = vpop.permute.xlu0 %452
    %v455 = vmul.f32 %v437, %v453
    %457 = vrot.lane.b32.xlu0 %v455, 32
    %v458 = vpop.permute.xlu0 %457
    %v459 = vsel %vm357, %v458, 0
    %461 = vmatprep.subr.mxu0 0.0
    %462 = vmatpush1.msra.mxu0 %v353
    %463 = vmatprep.subr.mxu0 0.0
    %464 = vmatpush1.msra.mxu0 %v354
    %465 = vmatprep.subr.mxu0 0.0
    %466 = vmatpush1.msra.mxu0 %v355
    %467 = vmatprep.subr.mxu0 0.0
    %468 = vmatpush1.msra.mxu0 %v356
    %469 = vmatprep.subr.mxu0 0.0
    %470 = vmatpush1.msra.mxu0 0.0
    %471 = vmatprep.subr.mxu0 0.0
    %472 = vmatpush1.msra.mxu0 0.0
    %473 = vmatprep.subr.mxu0 0.0
    %474 = vmatpush1.msra.mxu0 0.0
    %475 = vmatprep.subr.mxu0 0.0
    %476 = vmatpush1.msra.mxu0 0.0
    %477 = vmatprep.subr.mxu0 0.0
    %478 = vmatpush1.msra.mxu0 0.0
    %479 = vmatprep.subr.mxu0 0.0
    %480 = vmatpush1.msra.mxu0 0.0
    %481 = vmatprep.subr.mxu0 0.0
    %482 = vmatpush1.msra.mxu0 0.0
    %483 = vmatprep.subr.mxu0 0.0
    %484 = vmatpush1.msra.mxu0 0.0
    %485 = vmatprep.subr.mxu0 0.0
    %486 = vmatpush1.msra.mxu0 0.0
    %487 = vmatprep.subr.mxu0 0.0
    %488 = vmatpush1.msra.mxu0 0.0
    %489 = vmatprep.subr.mxu0 0.0
    %490 = vmatpush1.msra.mxu0 0.0
    %491 = vmatprep.subr.mxu0 0.0
    %492 = vmatpush1.msra.mxu0 0.0
    %493 = vmatprep.subr.mxu0 0.0
    %494 = vmatpush1.msra.mxu0 0.0
    %495 = vmatprep.subr.mxu0 0.0
    %496 = vmatpush1.msra.mxu0 0.0
    %497 = vmatprep.subr.mxu0 0.0
    %498 = vmatpush1.msra.mxu0 0.0
    %499 = vmatprep.subr.mxu0 0.0
    %500 = vmatpush1.msra.mxu0 0.0
    %501 = vmatprep.subr.mxu0 0.0
    %502 = vmatpush1.msra.mxu0 0.0
    %503 = vmatprep.subr.mxu0 0.0
    %504 = vmatpush1.msra.mxu0 0.0
    %505 = vmatprep.subr.mxu0 0.0
    %506 = vmatpush1.msra.mxu0 0.0
    %507 = vmatprep.subr.mxu0 0.0
    %508 = vmatpush1.msra.mxu0 0.0
    %509 = vmatprep.subr.mxu0 0.0
    %510 = vmatpush1.msra.mxu0 0.0
    %511 = vmatprep.subr.mxu0 0.0
    %512 = vmatpush1.msra.mxu0 0.0
    %513 = vmatprep.subr.mxu0 0.0
    %514 = vmatpush1.msra.mxu0 0.0
    %515 = vmatprep.subr.mxu0 0.0
    %516 = vmatpush1.msra.mxu0 0.0
    %517 = vmatprep.subr.mxu0 0.0
    %518 = vmatpush1.msra.mxu0 0.0
    %519 = vmatprep.subr.mxu0 0.0
    %520 = vmatpush1.msra.mxu0 0.0
    %521 = vmatprep.subr.mxu0 0.0
    %522 = vmatpush1.msra.mxu0 0.0
    %523 = vmatprep.subr.mxu0 0.0
    %524 = vmatpush1.msra.mxu0 0.0
    %525 = vmatprep.mubr.f32.mxu0 0.0
    %526 = vmatmul.mubr.f32.gmra.mrb[0].mxu0 %v459
    %v527 = vpop.f32.mrb[0].mxu0
    %v528 = vadd.f32 0.0, %v527
    %v529 = vpop.f32.mrb[0].mxu0
    %530 = vdwg.mxu0
    %v531 = vadd.f32 %v227, %v528
    %v532 = vxor.u32 %v531, 2147483648
    %v533 = vmul.f32 %v532, 1.442695
    %v534 = vpow.pop %v533
    %v535 = vadd.f32 %v534, 1.0
    %v536 = vrcp.pop %v535
    %v537 = vmul.f32 1.0, %v536
    %v538 = vtanh.pop %v531
    %v539 = vmul.f32 %v537, %v449
    %541 = vrot.lane.b32.xlu0 %v538, 64
    %v542 = vpop.permute.xlu0 %541
    %v544 = vmul.f32 %v537, %v542
    %546 = vrot.lane.b32.xlu0 %v544, 32
    %v547 = vpop.permute.xlu0 %546
    %v549 = vadd.f32 %v539, %v547
    %v550 = vtanh.pop %v549
    %552 = vrot.lane.b32.xlu0 %v550, 64
    %v553 = vpop.permute.xlu0 %552
    %v555 = vmul.f32 %v537, %v553
    %557 = vrot.lane.b32.xlu0 %v555, 32
    %v558 = vpop.permute.xlu0 %557
    %v559 = vsel %vm357, %v558, 0
    %561 = vmatprep.subr.mxu0 0.0
    %562 = vmatpush1.msra.mxu0 %v353
    %563 = vmatprep.subr.mxu0 0.0
    %564 = vmatpush1.msra.mxu0 %v354
    %565 = vmatprep.subr.mxu0 0.0
    %566 = vmatpush1.msra.mxu0 %v355
    %567 = vmatprep.subr.mxu0 0.0
    %568 = vmatpush1.msra.mxu0 %v356
    %569 = vmatprep.subr.mxu0 0.0
    %570 = vmatpush1.msra.mxu0 0.0
    %571 = vmatprep.subr.mxu0 0.0
    %572 = vmatpush1.msra.mxu0 0.0
    %573 = vmatprep.subr.mxu0 0.0
    %574 = vmatpush1.msra.mxu0 0.0
    %575 = vmatprep.subr.mxu0 0.0
    %576 = vmatpush1.msra.mxu0 0.0
    %577 = vmatprep.subr.mxu0 0.0
    %578 = vmatpush1.msra.mxu0 0.0
    %579 = vmatprep.subr.mxu0 0.0
    %580 = vmatpush1.msra.mxu0 0.0
    %581 = vmatprep.subr.mxu0 0.0
    %582 = vmatpush1.msra.mxu0 0.0
    %583 = vmatprep.subr.mxu0 0.0
    %584 = vmatpush1.msra.mxu0 0.0
    %585 = vmatprep.subr.mxu0 0.0
    %586 = vmatpush1.msra.mxu0 0.0
    %587 = vmatprep.subr.mxu0 0.0
    %588 = vmatpush1.msra.mxu0 0.0
    %589 = vmatprep.subr.mxu0 0.0
    %590 = vmatpush1.msra.mxu0 0.0
    %591 = vmatprep.subr.mxu0 0.0
    %592 = vmatpush1.msra.mxu0 0.0
    %593 = vmatprep.subr.mxu0 0.0
    %594 = vmatpush1.msra.mxu0 0.0
    %595 = vmatprep.subr.mxu0 0.0
    %596 = vmatpush1.msra.mxu0 0.0
    %597 = vmatprep.subr.mxu0 0.0
    %598 = vmatpush1.msra.mxu0 0.0
    %599 = vmatprep.subr.mxu0 0.0
    %600 = vmatpush1.msra.mxu0 0.0
    %601 = vmatprep.subr.mxu0 0.0
    %602 = vmatpush1.msra.mxu0 0.0
    %603 = vmatprep.subr.mxu0 0.0
    %604 = vmatpush1.msra.mxu0 0.0
    %605 = vmatprep.subr.mxu0 0.0
    %606 = vmatpush1.msra.mxu0 0.0
    %607 = vmatprep.subr.mxu0 0.0
    %608 = vmatpush1.msra.mxu0 0.0
    %609 = vmatprep.subr.mxu0 0.0
    %610 = vmatpush1.msra.mxu0 0.0
    %611 = vmatprep.subr.mxu0 0.0
    %612 = vmatpush1.msra.mxu0 0.0
    %613 = vmatprep.subr.mxu0 0.0
    %614 = vmatpush1.msra.mxu0 0.0
    %615 = vmatprep.subr.mxu0 0.0
    %616 = vmatpush1.msra.mxu0 0.0
    %617 = vmatprep.subr.mxu0 0.0
    %618 = vmatpush1.msra.mxu0 0.0
    %619 = vmatprep.subr.mxu0 0.0
    %620 = vmatpush1.msra.mxu0 0.0
    %621 = vmatprep.subr.mxu0 0.0
    %622 = vmatpush1.msra.mxu0 0.0
    %623 = vmatprep.subr.mxu0 0.0
    %624 = vmatpush1.msra.mxu0 0.0
    %625 = vmatprep.mubr.f32.mxu0 0.0
    %626 = vmatmul.mubr.f32.gmra.mrb[0].mxu0 %v559
    %v627 = vpop.f32.mrb[0].mxu0
    %v628 = vadd.f32 0.0, %v627
    %v629 = vpop.f32.mrb[0].mxu0
    %630 = vdwg.mxu0
    %v631 = vadd.f32 %v232, %v628
    %v632 = vxor.u32 %v631, 2147483648
    %v633 = vmul.f32 %v632, 1.442695
    %v634 = vpow.pop %v633
    %v635 = vadd.f32 %v634, 1.0
    %v636 = vrcp.pop %v635
    %v637 = vmul.f32 1.0, %v636
    %v638 = vtanh.pop %v631
    %v639 = vmul.f32 %v637, %v549
    %641 = vrot.lane.b32.xlu0 %v638, 64
    %v642 = vpop.permute.xlu0 %641
    %v644 = vmul.f32 %v637, %v642
    %646 = vrot.lane.b32.xlu0 %v644, 32
    %v647 = vpop.permute.xlu0 %646
    %v649 = vadd.f32 %v639, %v647
    %v650 = vtanh.pop %v649
    %652 = vrot.lane.b32.xlu0 %v650, 64
    %v653 = vpop.permute.xlu0 %652
    %v655 = vmul.f32 %v637, %v653
    %657 = vrot.lane.b32.xlu0 %v655, 32
    %v658 = vpop.permute.xlu0 %657
    %v659 = vsel %vm357, %v658, 0
    %661 = vmatprep.subr.mxu0 0.0
    %662 = vmatpush1.msra.mxu0 %v353
    %663 = vmatprep.subr.mxu0 0.0
    %664 = vmatpush1.msra.mxu0 %v354
    %665 = vmatprep.subr.mxu0 0.0
    %666 = vmatpush1.msra.mxu0 %v355
    %667 = vmatprep.subr.mxu0 0.0
    %668 = vmatpush1.msra.mxu0 %v356
    %669 = vmatprep.subr.mxu0 0.0
    %670 = vmatpush1.msra.mxu0 0.0
    %671 = vmatprep.subr.mxu0 0.0
    %672 = vmatpush1.msra.mxu0 0.0
    %673 = vmatprep.subr.mxu0 0.0
    %674 = vmatpush1.msra.mxu0 0.0
    %675 = vmatprep.subr.mxu0 0.0
    %676 = vmatpush1.msra.mxu0 0.0
    %677 = vmatprep.subr.mxu0 0.0
    %678 = vmatpush1.msra.mxu0 0.0
    %679 = vmatprep.subr.mxu0 0.0
    %680 = vmatpush1.msra.mxu0 0.0
    %681 = vmatprep.subr.mxu0 0.0
    %682 = vmatpush1.msra.mxu0 0.0
    %683 = vmatprep.subr.mxu0 0.0
    %684 = vmatpush1.msra.mxu0 0.0
    %685 = vmatprep.subr.mxu0 0.0
    %686 = vmatpush1.msra.mxu0 0.0
    %687 = vmatprep.subr.mxu0 0.0
    %688 = vmatpush1.msra.mxu0 0.0
    %689 = vmatprep.subr.mxu0 0.0
    %690 = vmatpush1.msra.mxu0 0.0
    %691 = vmatprep.subr.mxu0 0.0
    %692 = vmatpush1.msra.mxu0 0.0
    %693 = vmatprep.subr.mxu0 0.0
    %694 = vmatpush1.msra.mxu0 0.0
    %695 = vmatprep.subr.mxu0 0.0
    %696 = vmatpush1.msra.mxu0 0.0
    %697 = vmatprep.subr.mxu0 0.0
    %698 = vmatpush1.msra.mxu0 0.0
    %699 = vmatprep.subr.mxu0 0.0
    %700 = vmatpush1.msra.mxu0 0.0
    %701 = vmatprep.subr.mxu0 0.0
    %702 = vmatpush1.msra.mxu0 0.0
    %703 = vmatprep.subr.mxu0 0.0
    %704 = vmatpush1.msra.mxu0 0.0
    %705 = vmatprep.subr.mxu0 0.0
    %706 = vmatpush1.msra.mxu0 0.0
    %707 = vmatprep.subr.mxu0 0.0
    %708 = vmatpush1.msra.mxu0 0.0
    %709 = vmatprep.subr.mxu0 0.0
    %710 = vmatpush1.msra.mxu0 0.0
    %711 = vmatprep.subr.mxu0 0.0
    %712 = vmatpush1.msra.mxu0 0.0
    %713 = vmatprep.subr.mxu0 0.0
    %714 = vmatpush1.msra.mxu0 0.0
    %715 = vmatprep.subr.mxu0 0.0
    %716 = vmatpush1.msra.mxu0 0.0
    %717 = vmatprep.subr.mxu0 0.0
    %718 = vmatpush1.msra.mxu0 0.0
    %719 = vmatprep.subr.mxu0 0.0
    %720 = vmatpush1.msra.mxu0 0.0
    %721 = vmatprep.subr.mxu0 0.0
    %722 = vmatpush1.msra.mxu0 0.0
    %723 = vmatprep.subr.mxu0 0.0
    %724 = vmatpush1.msra.mxu0 0.0
    %725 = vmatprep.mubr.f32.mxu0 0.0
    %726 = vmatmul.mubr.f32.gmra.mrb[0].mxu0 %v659
    %v727 = vpop.f32.mrb[0].mxu0
    %v728 = vadd.f32 0.0, %v727
    %v729 = vpop.f32.mrb[0].mxu0
    %730 = vdwg.mxu0
    %v731 = vadd.f32 %v237, %v728
    %v732 = vxor.u32 %v731, 2147483648
    %v733 = vmul.f32 %v732, 1.442695
    %v734 = vpow.pop %v733
    %v735 = vadd.f32 %v734, 1.0
    %v736 = vrcp.pop %v735
    %v737 = vmul.f32 1.0, %v736
    %v738 = vtanh.pop %v731
    %v739 = vmul.f32 %v737, %v649
    %741 = vrot.lane.b32.xlu0 %v738, 64
    %v742 = vpop.permute.xlu0 %741
    %v744 = vmul.f32 %v737, %v742
    %746 = vrot.lane.b32.xlu0 %v744, 32
    %v747 = vpop.permute.xlu0 %746
    %v749 = vadd.f32 %v739, %v747
    %v750 = vtanh.pop %v749
    %752 = vrot.lane.b32.xlu0 %v750, 64
    %v753 = vpop.permute.xlu0 %752
    %v755 = vmul.f32 %v737, %v753
    %757 = vrot.lane.b32.xlu0 %v755, 32
    %v758 = vpop.permute.xlu0 %757
    %v759 = vsel %vm357, %v758, 0
    %761 = vmatprep.subr.mxu0 0.0
    %762 = vmatpush1.msra.mxu0 %v353
    %763 = vmatprep.subr.mxu0 0.0
    %764 = vmatpush1.msra.mxu0 %v354
    %765 = vmatprep.subr.mxu0 0.0
    %766 = vmatpush1.msra.mxu0 %v355
    %767 = vmatprep.subr.mxu0 0.0
    %768 = vmatpush1.msra.mxu0 %v356
    %769 = vmatprep.subr.mxu0 0.0
    %770 = vmatpush1.msra.mxu0 0.0
    %771 = vmatprep.subr.mxu0 0.0
    %772 = vmatpush1.msra.mxu0 0.0
    %773 = vmatprep.subr.mxu0 0.0
    %774 = vmatpush1.msra.mxu0 0.0
    %775 = vmatprep.subr.mxu0 0.0
    %776 = vmatpush1.msra.mxu0 0.0
    %777 = vmatprep.subr.mxu0 0.0
    %778 = vmatpush1.msra.mxu0 0.0
    %779 = vmatprep.subr.mxu0 0.0
    %780 = vmatpush1.msra.mxu0 0.0
    %781 = vmatprep.subr.mxu0 0.0
    %782 = vmatpush1.msra.mxu0 0.0
    %783 = vmatprep.subr.mxu0 0.0
    %784 = vmatpush1.msra.mxu0 0.0
    %785 = vmatprep.subr.mxu0 0.0
    %786 = vmatpush1.msra.mxu0 0.0
    %787 = vmatprep.subr.mxu0 0.0
    %788 = vmatpush1.msra.mxu0 0.0
    %789 = vmatprep.subr.mxu0 0.0
    %790 = vmatpush1.msra.mxu0 0.0
    %791 = vmatprep.subr.mxu0 0.0
    %792 = vmatpush1.msra.mxu0 0.0
    %793 = vmatprep.subr.mxu0 0.0
    %794 = vmatpush1.msra.mxu0 0.0
    %795 = vmatprep.subr.mxu0 0.0
    %796 = vmatpush1.msra.mxu0 0.0
    %797 = vmatprep.subr.mxu0 0.0
    %798 = vmatpush1.msra.mxu0 0.0
    %799 = vmatprep.subr.mxu0 0.0
    %800 = vmatpush1.msra.mxu0 0.0
    %801 = vmatprep.subr.mxu0 0.0
    %802 = vmatpush1.msra.mxu0 0.0
    %803 = vmatprep.subr.mxu0 0.0
    %804 = vmatpush1.msra.mxu0 0.0
    %805 = vmatprep.subr.mxu0 0.0
    %806 = vmatpush1.msra.mxu0 0.0
    %807 = vmatprep.subr.mxu0 0.0
    %808 = vmatpush1.msra.mxu0 0.0
    %809 = vmatprep.subr.mxu0 0.0
    %810 = vmatpush1.msra.mxu0 0.0
    %811 = vmatprep.subr.mxu0 0.0
    %812 = vmatpush1.msra.mxu0 0.0
    %813 = vmatprep.subr.mxu0 0.0
    %814 = vmatpush1.msra.mxu0 0.0
    %815 = vmatprep.subr.mxu0 0.0
    %816 = vmatpush1.msra.mxu0 0.0
    %817 = vmatprep.subr.mxu0 0.0
    %818 = vmatpush1.msra.mxu0 0.0
    %819 = vmatprep.subr.mxu0 0.0
    %820 = vmatpush1.msra.mxu0 0.0
    %821 = vmatprep.subr.mxu0 0.0
    %822 = vmatpush1.msra.mxu0 0.0
    %823 = vmatprep.subr.mxu0 0.0
    %824 = vmatpush1.msra.mxu0 0.0
    %825 = vmatprep.mubr.f32.mxu0 0.0
    %826 = vmatmul.mubr.f32.gmra.mrb[0].mxu0 %v759
    %v827 = vpop.f32.mrb[0].mxu0
    %v828 = vadd.f32 0.0, %v827
    %v829 = vpop.f32.mrb[0].mxu0
    %830 = vdwg.mxu0
    %v831 = vadd.f32 %v242, %v828
    %v832 = vxor.u32 %v831, 2147483648
    %v833 = vmul.f32 %v832, 1.442695
    %v834 = vpow.pop %v833
    %v835 = vadd.f32 %v834, 1.0
    %v836 = vrcp.pop %v835
    %v837 = vmul.f32 1.0, %v836
    %v838 = vtanh.pop %v831
    %v839 = vmul.f32 %v837, %v749
    %841 = vrot.lane.b32.xlu0 %v838, 64
    %v842 = vpop.permute.xlu0 %841
    %v844 = vmul.f32 %v837, %v842
    %846 = vrot.lane.b32.xlu0 %v844, 32
    %v847 = vpop.permute.xlu0 %846
    %v849 = vadd.f32 %v839, %v847
    %v850 = vtanh.pop %v849
    %852 = vrot.lane.b32.xlu0 %v850, 64
    %v853 = vpop.permute.xlu0 %852
    %v855 = vmul.f32 %v837, %v853
    %857 = vrot.lane.b32.xlu0 %v855, 32
    %v858 = vpop.permute.xlu0 %857
    %v859 = vsel %vm357, %v858, 0
    %861 = vmatprep.subr.mxu0 0.0
    %862 = vmatpush1.msra.mxu0 %v353
    %863 = vmatprep.subr.mxu0 0.0
    %864 = vmatpush1.msra.mxu0 %v354
    %865 = vmatprep.subr.mxu0 0.0
    %866 = vmatpush1.msra.mxu0 %v355
    %867 = vmatprep.subr.mxu0 0.0
    %868 = vmatpush1.msra.mxu0 %v356
    %869 = vmatprep.subr.mxu0 0.0
    %870 = vmatpush1.msra.mxu0 0.0
    %871 = vmatprep.subr.mxu0 0.0
    %872 = vmatpush1.msra.mxu0 0.0
    %873 = vmatprep.subr.mxu0 0.0
    %874 = vmatpush1.msra.mxu0 0.0
    %875 = vmatprep.subr.mxu0 0.0
    %876 = vmatpush1.msra.mxu0 0.0
    %877 = vmatprep.subr.mxu0 0.0
    %878 = vmatpush1.msra.mxu0 0.0
    %879 = vmatprep.subr.mxu0 0.0
    %880 = vmatpush1.msra.mxu0 0.0
    %881 = vmatprep.subr.mxu0 0.0
    %882 = vmatpush1.msra.mxu0 0.0
    %883 = vmatprep.subr.mxu0 0.0
    %884 = vmatpush1.msra.mxu0 0.0
    %885 = vmatprep.subr.mxu0 0.0
    %886 = vmatpush1.msra.mxu0 0.0
    %887 = vmatprep.subr.mxu0 0.0
    %888 = vmatpush1.msra.mxu0 0.0
    %889 = vmatprep.subr.mxu0 0.0
    %890 = vmatpush1.msra.mxu0 0.0
    %891 = vmatprep.subr.mxu0 0.0
    %892 = vmatpush1.msra.mxu0 0.0
    %893 = vmatprep.subr.mxu0 0.0
    %894 = vmatpush1.msra.mxu0 0.0
    %895 = vmatprep.subr.mxu0 0.0
    %896 = vmatpush1.msra.mxu0 0.0
    %897 = vmatprep.subr.mxu0 0.0
    %898 = vmatpush1.msra.mxu0 0.0
    %899 = vmatprep.subr.mxu0 0.0
    %900 = vmatpush1.msra.mxu0 0.0
    %901 = vmatprep.subr.mxu0 0.0
    %902 = vmatpush1.msra.mxu0 0.0
    %903 = vmatprep.subr.mxu0 0.0
    %904 = vmatpush1.msra.mxu0 0.0
    %905 = vmatprep.subr.mxu0 0.0
    %906 = vmatpush1.msra.mxu0 0.0
    %907 = vmatprep.subr.mxu0 0.0
    %908 = vmatpush1.msra.mxu0 0.0
    %909 = vmatprep.subr.mxu0 0.0
    %910 = vmatpush1.msra.mxu0 0.0
    %911 = vmatprep.subr.mxu0 0.0
    %912 = vmatpush1.msra.mxu0 0.0
    %913 = vmatprep.subr.mxu0 0.0
    %914 = vmatpush1.msra.mxu0 0.0
    %915 = vmatprep.subr.mxu0 0.0
    %916 = vmatpush1.msra.mxu0 0.0
    %917 = vmatprep.subr.mxu0 0.0
    %918 = vmatpush1.msra.mxu0 0.0
    %919 = vmatprep.subr.mxu0 0.0
    %920 = vmatpush1.msra.mxu0 0.0
    %921 = vmatprep.subr.mxu0 0.0
    %922 = vmatpush1.msra.mxu0 0.0
    %923 = vmatprep.subr.mxu0 0.0
    %924 = vmatpush1.msra.mxu0 0.0
    %925 = vmatprep.mubr.f32.mxu0 0.0
    %926 = vmatmul.mubr.f32.gmra.mrb[0].mxu0 %v859
    %v927 = vpop.f32.mrb[0].mxu0
    %v928 = vadd.f32 0.0, %v927
    %v929 = vpop.f32.mrb[0].mxu0
    %930 = vdwg.mxu0
    %v931 = vadd.f32 %v247, %v928
    %v932 = vxor.u32 %v931, 2147483648
    %v933 = vmul.f32 %v932, 1.442695
    %v934 = vpow.pop %v933
    %v935 = vadd.f32 %v934, 1.0
    %v936 = vrcp.pop %v935
    %v937 = vmul.f32 1.0, %v936
    %v938 = vtanh.pop %v931
    %v939 = vmul.f32 %v937, %v849
    %941 = vrot.lane.b32.xlu0 %v938, 64
    %v942 = vpop.permute.xlu0 %941
    %v944 = vmul.f32 %v937, %v942
    %946 = vrot.lane.b32.xlu0 %v944, 32
    %v947 = vpop.permute.xlu0 %946
    %v949 = vadd.f32 %v939, %v947
    %v950 = vtanh.pop %v949
    %952 = vrot.lane.b32.xlu0 %v950, 64
    %v953 = vpop.permute.xlu0 %952
    %v955 = vmul.f32 %v937, %v953
    %957 = vrot.lane.b32.xlu0 %v955, 32
    %v958 = vpop.permute.xlu0 %957
    %v959 = vsel %vm357, %v958, 0
    %961 = vmatprep.subr.mxu0 0.0
    %962 = vmatpush1.msra.mxu0 %v353
    %963 = vmatprep.subr.mxu0 0.0
    %964 = vmatpush1.msra.mxu0 %v354
    %965 = vmatprep.subr.mxu0 0.0
    %966 = vmatpush1.msra.mxu0 %v355
    %967 = vmatprep.subr.mxu0 0.0
    %968 = vmatpush1.msra.mxu0 %v356
    %969 = vmatprep.subr.mxu0 0.0
    %970 = vmatpush1.msra.mxu0 0.0
    %971 = vmatprep.subr.mxu0 0.0
    %972 = vmatpush1.msra.mxu0 0.0
    %973 = vmatprep.subr.mxu0 0.0
    %974 = vmatpush1.msra.mxu0 0.0
    %975 = vmatprep.subr.mxu0 0.0
    %976 = vmatpush1.msra.mxu0 0.0
    %977 = vmatprep.subr.mxu0 0.0
    %978 = vmatpush1.msra.mxu0 0.0
    %979 = vmatprep.subr.mxu0 0.0
    %980 = vmatpush1.msra.mxu0 0.0
    %981 = vmatprep.subr.mxu0 0.0
    %982 = vmatpush1.msra.mxu0 0.0
    %983 = vmatprep.subr.mxu0 0.0
    %984 = vmatpush1.msra.mxu0 0.0
    %985 = vmatprep.subr.mxu0 0.0
    %986 = vmatpush1.msra.mxu0 0.0
    %987 = vmatprep.subr.mxu0 0.0
    %988 = vmatpush1.msra.mxu0 0.0
    %989 = vmatprep.subr.mxu0 0.0
    %990 = vmatpush1.msra.mxu0 0.0
    %991 = vmatprep.subr.mxu0 0.0
    %992 = vmatpush1.msra.mxu0 0.0
    %993 = vmatprep.subr.mxu0 0.0
    %994 = vmatpush1.msra.mxu0 0.0
    %995 = vmatprep.subr.mxu0 0.0
    %996 = vmatpush1.msra.mxu0 0.0
    %997 = vmatprep.subr.mxu0 0.0
    %998 = vmatpush1.msra.mxu0 0.0
    %999 = vmatprep.subr.mxu0 0.0
    %1000 = vmatpush1.msra.mxu0 0.0
    %1001 = vmatprep.subr.mxu0 0.0
    %1002 = vmatpush1.msra.mxu0 0.0
    %1003 = vmatprep.subr.mxu0 0.0
    %1004 = vmatpush1.msra.mxu0 0.0
    %1005 = vmatprep.subr.mxu0 0.0
    %1006 = vmatpush1.msra.mxu0 0.0
    %1007 = vmatprep.subr.mxu0 0.0
    %1008 = vmatpush1.msra.mxu0 0.0
    %1009 = vmatprep.subr.mxu0 0.0
    %1010 = vmatpush1.msra.mxu0 0.0
    %1011 = vmatprep.subr.mxu0 0.0
    %1012 = vmatpush1.msra.mxu0 0.0
    %1013 = vmatprep.subr.mxu0 0.0
    %1014 = vmatpush1.msra.mxu0 0.0
    %1015 = vmatprep.subr.mxu0 0.0
    %1016 = vmatpush1.msra.mxu0 0.0
    %1017 = vmatprep.subr.mxu0 0.0
    %1018 = vmatpush1.msra.mxu0 0.0
    %1019 = vmatprep.subr.mxu0 0.0
    %1020 = vmatpush1.msra.mxu0 0.0
    %1021 = vmatprep.subr.mxu0 0.0
    %1022 = vmatpush1.msra.mxu0 0.0
    %1023 = vmatprep.subr.mxu0 0.0
    %1024 = vmatpush1.msra.mxu0 0.0
    %1025 = vmatprep.mubr.f32.mxu0 0.0
    %1026 = vmatmul.mubr.f32.gmra.mrb[0].mxu0 %v959
    %v1027 = vpop.f32.mrb[0].mxu0
    %v1028 = vadd.f32 0.0, %v1027
    %v1029 = vpop.f32.mrb[0].mxu0
    %1030 = vdwg.mxu0
    %v1031 = vadd.f32 %v252, %v1028
    %v1032 = vxor.u32 %v1031, 2147483648
    %v1033 = vmul.f32 %v1032, 1.442695
    %v1034 = vpow.pop %v1033
    %v1035 = vadd.f32 %v1034, 1.0
    %v1036 = vrcp.pop %v1035
    %v1037 = vmul.f32 1.0, %v1036
    %v1038 = vtanh.pop %v1031
    %v1039 = vmul.f32 %v1037, %v949
    %1041 = vrot.lane.b32.xlu0 %v1038, 64
    %v1042 = vpop.permute.xlu0 %1041
    %v1044 = vmul.f32 %v1037, %v1042
    %1046 = vrot.lane.b32.xlu0 %v1044, 32
    %v1047 = vpop.permute.xlu0 %1046
    %v1049 = vadd.f32 %v1039, %v1047
    %v1050 = vtanh.pop %v1049
    %1052 = vrot.lane.b32.xlu0 %v1050, 64
    %v1053 = vpop.permute.xlu0 %1052
    %v1055 = vmul.f32 %v1037, %v1053
    %1057 = vrot.lane.b32.xlu0 %v1055, 32
    %v1058 = vpop.permute.xlu0 %1057
    %v1059 = vsel %vm357, %v1058, 0
    %1061 = vmatprep.subr.mxu0 0.0
    %1062 = vmatpush1.msra.mxu0 %v353
    %1063 = vmatprep.subr.mxu0 0.0
    %1064 = vmatpush1.msra.mxu0 %v354
    %1065 = vmatprep.subr.mxu0 0.0
    %1066 = vmatpush1.msra.mxu0 %v355
    %1067 = vmatprep.subr.mxu0 0.0
    %1068 = vmatpush1.msra.mxu0 %v356
    %1069 = vmatprep.subr.mxu0 0.0
    %1070 = vmatpush1.msra.mxu0 0.0
    %1071 = vmatprep.subr.mxu0 0.0
    %1072 = vmatpush1.msra.mxu0 0.0
    %1073 = vmatprep.subr.mxu0 0.0
    %1074 = vmatpush1.msra.mxu0 0.0
    %1075 = vmatprep.subr.mxu0 0.0
    %1076 = vmatpush1.msra.mxu0 0.0
    %1077 = vmatprep.subr.mxu0 0.0
    %1078 = vmatpush1.msra.mxu0 0.0
    %1079 = vmatprep.subr.mxu0 0.0
    %1080 = vmatpush1.msra.mxu0 0.0
    %1081 = vmatprep.subr.mxu0 0.0
    %1082 = vmatpush1.msra.mxu0 0.0
    %1083 = vmatprep.subr.mxu0 0.0
    %1084 = vmatpush1.msra.mxu0 0.0
    %1085 = vmatprep.subr.mxu0 0.0
    %1086 = vmatpush1.msra.mxu0 0.0
    %1087 = vmatprep.subr.mxu0 0.0
    %1088 = vmatpush1.msra.mxu0 0.0
    %1089 = vmatprep.subr.mxu0 0.0
    %1090 = vmatpush1.msra.mxu0 0.0
    %1091 = vmatprep.subr.mxu0 0.0
    %1092 = vmatpush1.msra.mxu0 0.0
    %1093 = vmatprep.subr.mxu0 0.0
    %1094 = vmatpush1.msra.mxu0 0.0
    %1095 = vmatprep.subr.mxu0 0.0
    %1096 = vmatpush1.msra.mxu0 0.0
    %1097 = vmatprep.subr.mxu0 0.0
    %1098 = vmatpush1.msra.mxu0 0.0
    %1099 = vmatprep.subr.mxu0 0.0
    %1100 = vmatpush1.msra.mxu0 0.0
    %1101 = vmatprep.subr.mxu0 0.0
    %1102 = vmatpush1.msra.mxu0 0.0
    %1103 = vmatprep.subr.mxu0 0.0
    %1104 = vmatpush1.msra.mxu0 0.0
    %1105 = vmatprep.subr.mxu0 0.0
    %1106 = vmatpush1.msra.mxu0 0.0
    %1107 = vmatprep.subr.mxu0 0.0
    %1108 = vmatpush1.msra.mxu0 0.0
    %1109 = vmatprep.subr.mxu0 0.0
    %1110 = vmatpush1.msra.mxu0 0.0
    %1111 = vmatprep.subr.mxu0 0.0
    %1112 = vmatpush1.msra.mxu0 0.0
    %1113 = vmatprep.subr.mxu0 0.0
    %1114 = vmatpush1.msra.mxu0 0.0
    %1115 = vmatprep.subr.mxu0 0.0
    %1116 = vmatpush1.msra.mxu0 0.0
    %1117 = vmatprep.subr.mxu0 0.0
    %1118 = vmatpush1.msra.mxu0 0.0
    %1119 = vmatprep.subr.mxu0 0.0
    %1120 = vmatpush1.msra.mxu0 0.0
    %1121 = vmatprep.subr.mxu0 0.0
    %1122 = vmatpush1.msra.mxu0 0.0
    %1123 = vmatprep.subr.mxu0 0.0
    %1124 = vmatpush1.msra.mxu0 0.0
    %1125 = vmatprep.mubr.f32.mxu0 0.0
    %1126 = vmatmul.mubr.f32.gmra.mrb[0].mxu0 %v1059
    %v1127 = vpop.f32.mrb[0].mxu0
    %v1128 = vadd.f32 0.0, %v1127
    %v1129 = vpop.f32.mrb[0].mxu0
    %1130 = vdwg.mxu0
    %v1131 = vadd.f32 %v257, %v1128
    %v1132 = vxor.u32 %v1131, 2147483648
    %v1133 = vmul.f32 %v1132, 1.442695
    %v1134 = vpow.pop %v1133
    %v1135 = vadd.f32 %v1134, 1.0
    %v1136 = vrcp.pop %v1135
    %v1137 = vmul.f32 1.0, %v1136
    %v1138 = vtanh.pop %v1131
    %v1139 = vmul.f32 %v1137, %v1049
    %1141 = vrot.lane.b32.xlu0 %v1138, 64
    %v1142 = vpop.permute.xlu0 %1141
    %v1144 = vmul.f32 %v1137, %v1142
    %1146 = vrot.lane.b32.xlu0 %v1144, 32
    %v1147 = vpop.permute.xlu0 %1146
    %v1149 = vadd.f32 %v1139, %v1147
    %v1150 = vtanh.pop %v1149
    %1152 = vrot.lane.b32.xlu0 %v1150, 64
    %v1153 = vpop.permute.xlu0 %1152
    %v1155 = vmul.f32 %v1137, %v1153
    %v1156 = vxor.u32 %v350, 2147483648
    %v1157 = vmul.f32 %v1156, 1.442695
    %v1158 = vpow.pop %v1157
    %v1159 = vadd.f32 %v1158, 1.0
    %v1160 = vrcp.pop %v1159
    %v1161 = vmul.f32 1.0, %v1160
    %v1162 = vtanh.pop %v350
    %1164 = vrot.lane.b32.xlu0 %v1162, 64
    %v1165 = vpop.permute.xlu0 %1164
    %v1167 = vmul.f32 %v1161, %v1165
    %v1168 = vtanh.pop %v1167
    %1170 = vrot.lane.b32.xlu0 %v1168, 96
    %v1171 = vpop.permute.xlu0 %1170
    %v1173 = vmul.f32 %v1161, %v1171
    %v1174 = vld [vmem:[%s6] sm:$0xff]
    %v1175 = vld [vmem:[%s6 + $0x8] sm:$0xff]
    %v1176 = vld [vmem:[%s6 + $0x10] sm:$0xff]
    %v1177 = vld [vmem:[%s6 + $0x18] sm:$0xff]
    %v1178 = vld [vmem:[#allocation7] sm:$0xff]
    %v1179 = vld [vmem:[#allocation7 + $0x8] sm:$0xff]
    %v1180 = vld [vmem:[#allocation7 + $0x10] sm:$0xff]
    %v1181 = vld [vmem:[#allocation7 + $0x18] sm:$0xff]
    %1183 = vrot.lane.b32.xlu0 %v1173, 32
    %v1184 = vpop.permute.xlu0 %1183
    %v1185 = vsel %vm357, %v1184, 0
    %1187 = vmatprep.subr.mxu0 0.0
    %1188 = vmatpush1.msra.mxu0 %v1178
    %1189 = vmatprep.subr.mxu0 0.0
    %1190 = vmatpush1.msra.mxu0 %v1179
    %1191 = vmatprep.subr.mxu0 0.0
    %1192 = vmatpush1.msra.mxu0 %v1180
    %1193 = vmatprep.subr.mxu0 0.0
    %1194 = vmatpush1.msra.mxu0 %v1181
    %1195 = vmatprep.subr.mxu0 0.0
    %1196 = vmatpush1.msra.mxu0 0.0
    %1197 = vmatprep.subr.mxu0 0.0
    %1198 = vmatpush1.msra.mxu0 0.0
    %1199 = vmatprep.subr.mxu0 0.0
    %1200 = vmatpush1.msra.mxu0 0.0
    %1201 = vmatprep.subr.mxu0 0.0
    %1202 = vmatpush1.msra.mxu0 0.0
    %1203 = vmatprep.subr.mxu0 0.0
    %1204 = vmatpush1.msra.mxu0 0.0
    %1205 = vmatprep.subr.mxu0 0.0
    %1206 = vmatpush1.msra.mxu0 0.0
    %1207 = vmatprep.subr.mxu0 0.0
    %1208 = vmatpush1.msra.mxu0 0.0
    %1209 = vmatprep.subr.mxu0 0.0
    %1210 = vmatpush1.msra.mxu0 0.0
    %1211 = vmatprep.subr.mxu0 0.0
    %1212 = vmatpush1.msra.mxu0 0.0
    %1213 = vmatprep.subr.mxu0 0.0
    %1214 = vmatpush1.msra.mxu0 0.0
    %1215 = vmatprep.subr.mxu0 0.0
    %1216 = vmatpush1.msra.mxu0 0.0
    %1217 = vmatprep.subr.mxu0 0.0
    %1218 = vmatpush1.msra.mxu0 0.0
    %1219 = vmatprep.subr.mxu0 0.0
    %1220 = vmatpush1.msra.mxu0 0.0
    %1221 = vmatprep.subr.mxu0 0.0
    %1222 = vmatpush1.msra.mxu0 0.0
    %1223 = vmatprep.subr.mxu0 0.0
    %1224 = vmatpush1.msra.mxu0 0.0
    %1225 = vmatprep.subr.mxu0 0.0
    %1226 = vmatpush1.msra.mxu0 0.0
    %1227 = vmatprep.subr.mxu0 0.0
    %1228 = vmatpush1.msra.mxu0 0.0
    %1229 = vmatprep.subr.mxu0 0.0
    %1230 = vmatpush1.msra.mxu0 0.0
    %1231 = vmatprep.subr.mxu0 0.0
    %1232 = vmatpush1.msra.mxu0 0.0
    %1233 = vmatprep.subr.mxu0 0.0
    %1234 = vmatpush1.msra.mxu0 0.0
    %1235 = vmatprep.subr.mxu0 0.0
    %1236 = vmatpush1.msra.mxu0 0.0
    %1237 = vmatprep.subr.mxu0 0.0
    %1238 = vmatpush1.msra.mxu0 0.0
    %1239 = vmatprep.subr.mxu0 0.0
    %1240 = vmatpush1.msra.mxu0 0.0
    %1241 = vmatprep.subr.mxu0 0.0
    %1242 = vmatpush1.msra.mxu0 0.0
    %1243 = vmatprep.subr.mxu0 0.0
    %1244 = vmatpush1.msra.mxu0 0.0
    %1245 = vmatprep.subr.mxu0 0.0
    %1246 = vmatpush1.msra.mxu0 0.0
    %1247 = vmatprep.subr.mxu0 0.0
    %1248 = vmatpush1.msra.mxu0 0.0
    %1249 = vmatprep.subr.mxu0 0.0
    %1250 = vmatpush1.msra.mxu0 0.0
    %1251 = vmatprep.mubr.f32.mxu0 0.0
    %1252 = vmatmul.mubr.f32.gmra.mrb[0].mxu0 %v1185
    %v1253 = vpop.f32.mrb[0].mxu0
    %v1254 = vadd.f32 0.0, %v1253
    %v1255 = vpop.f32.mrb[0].mxu0
    %1256 = vdwg.mxu0
    %1258 = vrot.lane.b32.xlu0 %v1155, 32
    %v1259 = vpop.permute.xlu0 %1258
    %v1260 = vsel %vm357, %v1259, 0
    %1262 = vmatprep.subr.mxu0 0.0
    %1263 = vmatpush1.msra.mxu0 %v1174
    %1264 = vmatprep.subr.mxu0 0.0
    %1265 = vmatpush1.msra.mxu0 %v1175
    %1266 = vmatprep.subr.mxu0 0.0
    %1267 = vmatpush1.msra.mxu0 %v1176
    %1268 = vmatprep.subr.mxu0 0.0
    %1269 = vmatpush1.msra.mxu0 %v1177
    %1270 = vmatprep.subr.mxu0 0.0
    %1271 = vmatpush1.msra.mxu0 0.0
    %1272 = vmatprep.subr.mxu0 0.0
    %1273 = vmatpush1.msra.mxu0 0.0
    %1274 = vmatprep.subr.mxu0 0.0
    %1275 = vmatpush1.msra.mxu0 0.0
    %1276 = vmatprep.subr.mxu0 0.0
    %1277 = vmatpush1.msra.mxu0 0.0
    %1278 = vmatprep.subr.mxu0 0.0
    %1279 = vmatpush1.msra.mxu0 0.0
    %1280 = vmatprep.subr.mxu0 0.0
    %1281 = vmatpush1.msra.mxu0 0.0
    %1282 = vmatprep.subr.mxu0 0.0
    %1283 = vmatpush1.msra.mxu0 0.0
    %1284 = vmatprep.subr.mxu0 0.0
    %1285 = vmatpush1.msra.mxu0 0.0
    %1286 = vmatprep.subr.mxu0 0.0
    %1287 = vmatpush1.msra.mxu0 0.0
    %1288 = vmatprep.subr.mxu0 0.0
    %1289 = vmatpush1.msra.mxu0 0.0
    %1290 = vmatprep.subr.mxu0 0.0
    %1291 = vmatpush1.msra.mxu0 0.0
    %1292 = vmatprep.subr.mxu0 0.0
    %1293 = vmatpush1.msra.mxu0 0.0
    %1294 = vmatprep.subr.mxu0 0.0
    %1295 = vmatpush1.msra.mxu0 0.0
    %1296 = vmatprep.subr.mxu0 0.0
    %1297 = vmatpush1.msra.mxu0 0.0
    %1298 = vmatprep.subr.mxu0 0.0
    %1299 = vmatpush1.msra.mxu0 0.0
    %1300 = vmatprep.subr.mxu0 0.0
    %1301 = vmatpush1.msra.mxu0 0.0
    %1302 = vmatprep.subr.mxu0 0.0
    %1303 = vmatpush1.msra.mxu0 0.0
    %1304 = vmatprep.subr.mxu0 0.0
    %1305 = vmatpush1.msra.mxu0 0.0
    %1306 = vmatprep.subr.mxu0 0.0
    %1307 = vmatpush1.msra.mxu0 0.0
    %1308 = vmatprep.subr.mxu0 0.0
    %1309 = vmatpush1.msra.mxu0 0.0
    %1310 = vmatprep.subr.mxu0 0.0
    %1311 = vmatpush1.msra.mxu0 0.0
    %1312 = vmatprep.subr.mxu0 0.0
    %1313 = vmatpush1.msra.mxu0 0.0
    %1314 = vmatprep.subr.mxu0 0.0
    %1315 = vmatpush1.msra.mxu0 0.0
    %1316 = vmatprep.subr.mxu0 0.0
    %1317 = vmatpush1.msra.mxu0 0.0
    %1318 = vmatprep.subr.mxu0 0.0
    %1319 = vmatpush1.msra.mxu0 0.0
    %1320 = vmatprep.subr.mxu0 0.0
    %1321 = vmatpush1.msra.mxu0 0.0
    %1322 = vmatprep.subr.mxu0 0.0
    %1323 = vmatpush1.msra.mxu0 0.0
    %1324 = vmatprep.subr.mxu0 0.0
    %1325 = vmatpush1.msra.mxu0 0.0
    %1326 = vmatprep.mubr.f32.mxu0 0.0
    %1327 = vmatmul.mubr.f32.gmra.mrb[0].mxu0 %v1260
    %v1328 = vpop.f32.mrb[0].mxu0
    %v1329 = vadd.f32 %v1254, %v1328
    %v1330 = vpop.f32.mrb[0].mxu0
    %1331 = vdwg.mxu0
    %v1332 = vld [vmem:[%s8] sm:$0x1]
    %v1334 = vlaneseq
    %v1335 = vshrl.u32 %v1334, 7
    %v1336 = vsub.s32 0, %v1335
    %v1337 = vrot.slane %v1332, %v1336
    %v1339 = vadd.f32 %v1329, %v1337
    %1340 = vst [vmem:[#allocation8] sm:$0xff] %v1339
    // Predicated region
    $region50: #{tpu_custom_call.1} parent=1 // pred_check
      _
    $region51: #{tpu_custom_call.1} parent=1 // pred_check_branch
      %1342 = sbr.rel (0) target = $region53
    $region52: #{tpu_custom_call.1} parent=1 // pred_region
      %s1344 = ssub.s32 128, 128
      %1345 = vsyncadd [#allocation4], %s1344
      %s1347 = sshll.u32 [#allocation8], 4
      %s1348 = int_to_ptr.vmem [resolvable:$true] %s1347
      %1350 = dma.vmem_to_hbm [thread:$0]  %s1348, 128, %s9, [#allocation4]
    $region53: #{tpu_custom_call.1} parent=1 // pred_fallthru
      _
    // Predicated region
    $region54: #{tpu_custom_call.1} parent=1 // pred_check
      _
    $region55: #{tpu_custom_call.1} parent=1 // pred_check_branch
      %1352 = sbr.rel (0) target = $region57
    $region56: #{tpu_custom_call.1} parent=1 // pred_region
      %1353 = dma.done [#allocation4], 128
    $region57: #{tpu_custom_call.1} parent=1 // pred_fallthru
      _
    %1354 = vsyncpa [#allocation3], 1
    %1355 = vsyncpa [#allocation6], 1
    %1356 = vsyncpa [#allocation4], 1

</llo_original>
